<compile_context>
chip_gen: v7x
topology: tpu7x:2x2x1
jax: 0.10.0
libtpu: 0.0.40
codegen_flags: <defaults>
</compile_context>

<pallas_src>
import functools

import jax
import jax.numpy as jnp
from jax.experimental import pallas as pl
from jax.experimental.pallas import tpu as pltpu


# ----------------------------- primary kernel ------------------------------ #

def _shortcut_a_strided_kernel(x_ref, o_ref, *, pad):
    # x_ref block: (B, C, H, W)      o_ref block: (B, C + 2*pad, H_out, W_out)
    b, c, h, w = x_ref.shape
    h_out, w_out = o_ref.shape[2], o_ref.shape[3]

    # Stride-2 spatial subsample straight off the VMEM ref.
    # Slice-only indexers (':' and pl.ds) -- no integer indexer.
    sub = x_ref[:, :, pl.ds(0, h_out, stride=2), pl.ds(0, w_out, stride=2)]

    # Channel zero-padding: every output element is written exactly once.
    if pad > 0:
        zeros_band = jnp.zeros((b, pad, h_out, w_out), o_ref.dtype)
        o_ref[:, 0:pad, :, :] = zeros_band
        o_ref[:, pad + c:pad + c + pad, :, :] = zeros_band
    o_ref[:, pad:pad + c, :, :] = sub.astype(o_ref.dtype)


# ------------------------ fallback kernel (known-good) ---------------------- #

def _even_selector(n_in, n_out):
    """(n_in, n_out) one-hot matrix; column j has a 1 at row 2*j -> picks x[::2]."""
    rows = jax.lax.broadcasted_iota(jnp.int32, (n_in, n_out), 0)
    cols = jax.lax.broadcasted_iota(jnp.int32, (n_in, n_out), 1)
    return (rows == 2 * cols).astype(jnp.float32)


def _shortcut_a_matmul_kernel(x_ref, o_ref, *, pad):
    # Exact one-hot selection via tiny matmuls. Kept only as a fallback path.
    b, c, h, w = x_ref.shape
    h_out, w_out = o_ref.shape[2], o_ref.shape[3]

    sel_w = _even_selector(w, w_out)          # (W, W_out)
    sel_h = _even_selector(h, h_out)          # (H, H_out)

    v = x_ref[...].astype(jnp.float32)        # (B, C, H, W)
    vc = jax.lax.dot_general(
        v.reshape(b * c * h, w), sel_w,
        (((1,), (0,)), ((), ())),
        precision=jax.lax.Precision.HIGHEST,
        preferred_element_type=jnp.float32,
    ).reshape(b, c, h, w_out)

    vt = jnp.swapaxes(vc, -1, -2).reshape(b * c * w_out, h)
    vr = jax.lax.dot_general(
        vt, sel_h,
        (((1,), (0,)), ((), ())),
        precision=jax.lax.Precision.HIGHEST,
        preferred_element_type=jnp.float32,
    ).reshape(b, c, w_out, h_out)
    sub = jnp.swapaxes(vr, -1, -2).astype(o_ref.dtype)   # (B, C, H_out, W_out)

    if pad > 0:
        zeros_band = jnp.zeros((b, pad, h_out, w_out), o_ref.dtype)
        o_ref[:, 0:pad, :, :] = zeros_band
        o_ref[:, pad + c:pad + c + pad, :, :] = zeros_band
    o_ref[:, pad:pad + c, :, :] = sub


# ------------------------------ tiling helpers ------------------------------ #

def _padded_block_bytes(c, h, w, dtype):
    """VMEM footprint of a (c, h, w) slab after dtype-aware (sublane, 128) tiling."""
    itemsize = jnp.dtype(dtype).itemsize
    sublane = max(8, 32 // max(itemsize, 1))     # 8 for f32, 16 for bf16, 32 for int8
    h_p = -(-h // sublane) * sublane
    w_p = -(-w // 128) * 128
    return c * h_p * w_p * itemsize


def _vmem_params():
    """(tile_budget_bytes, vmem_limit_bytes_or_None) -- generation-aware."""
    try:
        cap = int(pltpu.get_tpu_info().vmem_capacity_bytes)
    except Exception:
        cap = None
    if not cap or cap <= 0:
        # Unknown hardware: stay under every default scoped-VMEM limit.
        return 16 * 1024 * 1024, None
    budget = min(cap // 2, 64 * 1024 * 1024)      # budget for double-buffered in+out blocks
    limit = min(3 * cap // 4, 96 * 1024 * 1024)   # scoped limit with headroom for scratch
    return budget, limit


def _pick_batch_tile(n, in_item_bytes, out_item_bytes, budget_bytes):
    """Largest divisor of n whose double-buffered in+out blocks fit the budget.
    Keeps >=2 grid steps when possible and prefers an even step count so both
    v7x TensorCores get equal work under dimension_semantics=('parallel',)."""
    per_item = 2 * (in_item_bytes + out_item_bytes)   # x2: Pallas double-buffers blocks
    fitting = [d for d in range(1, n + 1) if n % d == 0 and d * per_item <= budget_bytes]
    if not fitting:
        # TODO(synk): tile the channel dim too for ImageNet-scale feature maps.
        return 1
    multi = [d for d in fitting if n // d >= 2]
    if n > 1 and multi:
        even = [d for d in multi if (n // d) % 2 == 0]
        return max(even) if even else max(multi)
    return max(fitting)


# --------------------------------- wrapper ---------------------------------- #

def _shortcut_a_pallas(kernel_body, x, pad, b_tile, vmem_limit):
    n, c, h, w = x.shape
    h_out, w_out = (h + 1) // 2, (w + 1) // 2
    c_out = c + 2 * pad
    cparams = dict(dimension_semantics=("parallel",))
    if vmem_limit is not None:
        cparams["vmem_limit_bytes"] = int(vmem_limit)
    return pl.pallas_call(
        functools.partial(kernel_body, pad=pad),
        out_shape=jax.ShapeDtypeStruct((n, c_out, h_out, w_out), x.dtype),
        grid=(n // b_tile,),
        in_specs=[pl.BlockSpec((b_tile, c, h, w), lambda i: (i, 0, 0, 0))],
        out_specs=pl.BlockSpec((b_tile, c_out, h_out, w_out),
                               lambda i: (i, 0, 0, 0)),
        compiler_params=pltpu.CompilerParams(**cparams),
    )(x)


_STRIDED_OK = None   # decided once, on the first eager call


def lambda_shortcut_a(x, planes):
    """Pallas TPU LambdaLayer option-A shortcut (NCHW in / NCHW out):
    F.pad(x[:, :, ::2, ::2], (0, 0, 0, 0, planes//4, planes//4), 'constant', 0).
    """
    global _STRIDED_OK
    n, c, h, w = x.shape
    pad = planes // 4
    h_out, w_out = (h + 1) // 2, (w + 1) // 2
    c_out = c + 2 * pad

    budget, vmem_limit = _vmem_params()
    b_tile = _pick_batch_tile(
        n,
        _padded_block_bytes(c, h, w, x.dtype),
        _padded_block_bytes(c_out, h_out, w_out, x.dtype),
        budget,
    )

    if _STRIDED_OK is None:
        # One-time probe: the strided-ds kernel must both lower and match the
        # pure-JAX reference; otherwise fall back to the known-good matmul path.
        try:
            out = _shortcut_a_pallas(_shortcut_a_strided_kernel, x, pad, b_tile, vmem_limit)
            jax.block_until_ready(out)
            ref = jnp.pad(x[:, :, ::2, ::2],
                          ((0, 0), (pad, pad), (0, 0), (0, 0)),
                          mode="constant", constant_values=0)
            _STRIDED_OK = bool(jnp.array_equal(out, ref))
            if _STRIDED_OK:
                return out
        except Exception:
            _STRIDED_OK = False

    kernel = _shortcut_a_strided_kernel if _STRIDED_OK else _shortcut_a_matmul_kernel
    return _shortcut_a_pallas(kernel, x, pad, b_tile, vmem_limit)


class LambdaLayer:
    """JAX mirror of the PyTorch LambdaLayer: forward(x) = lambd(x). No params."""

    def __init__(self, lambd):
        self.lambd = lambd

    def __call__(self, x):
        return self.lambd(x)


if __name__ == "__main__":
    key = jax.random.PRNGKey(0)
    N, C, H, W = 2, 4, 16, 16           # small NCHW input
    planes = 2 * C                      # resnet option-A usage: planes = 2*in_planes
    pad = planes // 4

    x = jax.random.normal(key, (N, C, H, W), dtype=jnp.float32)

    layer = LambdaLayer(lambda t: lambda_shortcut_a(t, planes))
    out = jax.block_until_ready(layer(x))

    # Pure-JAX reference of the PyTorch lambda:
    # F.pad(x[:, :, ::2, ::2], (0,0,0,0,planes//4,planes//4), "constant", 0)
    ref = jnp.pad(x[:, :, ::2, ::2],
                  ((0, 0), (pad, pad), (0, 0), (0, 0)),
                  mode="constant", constant_values=0.0)

    assert out.shape == (N, C + 2 * pad, H // 2, W // 2), out.shape
    assert out.dtype == x.dtype
    assert jnp.allclose(out, ref, atol=1e-6, rtol=0.0), \
        float(jnp.abs(out - ref).max())

    print("KERNEL_OK")
</pallas_src>

<mosaic_0001>
module attributes {stable_mosaic.version = 11 : i64} {
  func.func @_shortcut_a_strided_kernel(%arg0: i32, %arg1: memref<1x4x16x16xf32, #tpu.memory_space<vmem>>, %arg2: memref<1x8x8x8xf32, #tpu.memory_space<vmem>>) attributes {dimension_semantics = [#tpu.dimension_semantics<parallel>], iteration_bounds = array<i64: 2>, scalar_prefetch = 0 : i64, scratch_operands = 0 : i64, tpu.core_type = #tpu.core_type<tc>, window_params = [{transform_indices = @transform_0, window_bounds = array<i64: 1, 4, 16, 16>}, {transform_indices = @transform_1, window_bounds = array<i64: 1, 8, 8, 8>}]} {
    %c0 = arith.constant 0 : index
    %c0_0 = arith.constant 0 : index
    %c0_1 = arith.constant 0 : index
    %c0_2 = arith.constant 0 : index
    %0 = tpu.strided_load %arg1[%c0, %c0_0, %c0_1, %c0_2] {strides = array<i32: 1, 1, 2, 2>} : memref<1x4x16x16xf32, #tpu.memory_space<vmem>>, vector<1x4x8x8xf32>
    %cst = arith.constant 0.000000e+00 : f32
    %1 = vector.broadcast %cst : f32 to vector<1x2x8x8xf32>
    %c0_3 = arith.constant 0 : index
    %c0_4 = arith.constant 0 : index
    %c0_5 = arith.constant 0 : index
    %c0_6 = arith.constant 0 : index
    %2 = vector.load %arg2[%c0_3, %c0_4, %c0_5, %c0_6] : memref<1x8x8x8xf32, #tpu.memory_space<vmem>>, vector<1x2x8x8xf32>
    tpu.vector_store %arg2[%c0_3, %c0_4, %c0_5, %c0_6], %1 {strides = array<i32>} : memref<1x8x8x8xf32, #tpu.memory_space<vmem>>, vector<1x2x8x8xf32>,
    %c0_7 = arith.constant 0 : index
    %c6 = arith.constant 6 : index
    %c0_8 = arith.constant 0 : index
    %c0_9 = arith.constant 0 : index
    %3 = vector.load %arg2[%c0_7, %c6, %c0_8, %c0_9] : memref<1x8x8x8xf32, #tpu.memory_space<vmem>>, vector<1x2x8x8xf32>
    tpu.vector_store %arg2[%c0_7, %c6, %c0_8, %c0_9], %1 {strides = array<i32>} : memref<1x8x8x8xf32, #tpu.memory_space<vmem>>, vector<1x2x8x8xf32>,
    %c0_10 = arith.constant 0 : index
    %c2 = arith.constant 2 : index
    %c0_11 = arith.constant 0 : index
    %c0_12 = arith.constant 0 : index
    %4 = vector.load %arg2[%c0_10, %c2, %c0_11, %c0_12] : memref<1x8x8x8xf32, #tpu.memory_space<vmem>>, vector<1x4x8x8xf32>
    tpu.vector_store %arg2[%c0_10, %c2, %c0_11, %c0_12], %0 {strides = array<i32>} : memref<1x8x8x8xf32, #tpu.memory_space<vmem>>, vector<1x4x8x8xf32>,
    return
  }
  func.func @transform_0(%arg0: i32) -> (i32, i32, i32, i32) {
    %c0_i32 = arith.constant 0 : i32
    %c0_i32_0 = arith.constant 0 : i32
    %c0_i32_1 = arith.constant 0 : i32
    %c0_i32_2 = arith.constant 0 : i32
    return %arg0, %c0_i32, %c0_i32_0, %c0_i32_1 : i32, i32, i32, i32
  }
  func.func @transform_1(%arg0: i32) -> (i32, i32, i32, i32) {
    %c0_i32 = arith.constant 0 : i32
    %c0_i32_0 = arith.constant 0 : i32
    %c0_i32_1 = arith.constant 0 : i32
    %c0_i32_2 = arith.constant 0 : i32
    return %arg0, %c0_i32, %c0_i32_0, %c0_i32_1 : i32, i32, i32, i32
  }
}

module attributes {stable_mosaic.version = 11 : i64} {
  func.func @_shortcut_a_matmul_kernel(%arg0: i32, %arg1: memref<1x4x16x16xf32, #tpu.memory_space<vmem>>, %arg2: memref<1x8x8x8xf32, #tpu.memory_space<vmem>>) attributes {dimension_semantics = [#tpu.dimension_semantics<parallel>], iteration_bounds = array<i64: 2>, scalar_prefetch = 0 : i64, scratch_operands = 0 : i64, tpu.core_type = #tpu.core_type<tc>, window_params = [{transform_indices = @transform_0, window_bounds = array<i64: 1, 4, 16, 16>}, {transform_indices = @transform_1, window_bounds = array<i64: 1, 8, 8, 8>}]} {
    %0 = tpu.iota {dimensions = array<i32: 0>} : vector<16x8xi32>
    %1 = tpu.iota {dimensions = array<i32: 1>} : vector<16x8xi32>
    %c2_i32 = arith.constant 2 : i32
    %2 = vector.broadcast %c2_i32 : i32 to vector<16x8xi32>
    %3 = arith.muli %2, %1 : vector<16x8xi32>
    %4 = arith.cmpi eq, %0, %3 : vector<16x8xi32>
    %5 = arith.extui %4 : vector<16x8xi1> to vector<16x8xi32>
    %6 = arith.sitofp %5 : vector<16x8xi32> to vector<16x8xf32>
    %7 = tpu.iota {dimensions = array<i32: 0>} : vector<16x8xi32>
    %8 = tpu.iota {dimensions = array<i32: 1>} : vector<16x8xi32>
    %c2_i32_0 = arith.constant 2 : i32
    %9 = vector.broadcast %c2_i32_0 : i32 to vector<16x8xi32>
    %10 = arith.muli %9, %8 : vector<16x8xi32>
    %11 = arith.cmpi eq, %7, %10 : vector<16x8xi32>
    %12 = arith.extui %11 : vector<16x8xi1> to vector<16x8xi32>
    %13 = arith.sitofp %12 : vector<16x8xi32> to vector<16x8xf32>
    %c0 = arith.constant 0 : index
    %c0_1 = arith.constant 0 : index
    %c0_2 = arith.constant 0 : index
    %c0_3 = arith.constant 0 : index
    %14 = vector.load %arg1[%c0, %c0_1, %c0_2, %c0_3] : memref<1x4x16x16xf32, #tpu.memory_space<vmem>>, vector<1x4x16x16xf32>
    %15 = vector.shape_cast %14 : vector<1x4x16x16xf32> to vector<64x16xf32>
    %cst = arith.constant dense<0.000000e+00> : vector<64x8xf32>
    %16 = tpu.matmul %15, %6, %cst {dimension_numbers = #tpu.dot_dimension_numbers<[1], [0], [0], [1], [0, 0, 1, 1], [], []>, precision = #tpu.contract_precision<fp32>} : vector<64x16xf32>, vector<16x8xf32>, vector<64x8xf32> -> vector<64x8xf32>
    %17 = vector.shape_cast %16 : vector<64x8xf32> to vector<1x4x16x8xf32>
    %18 = tpu.transpose %17, [0, 1, 3, 2] : vector<1x4x16x8xf32> -> vector<1x4x8x16xf32>
    %19 = vector.shape_cast %18 : vector<1x4x8x16xf32> to vector<32x16xf32>
    %cst_4 = arith.constant dense<0.000000e+00> : vector<32x8xf32>
    %20 = tpu.matmul %19, %13, %cst_4 {dimension_numbers = #tpu.dot_dimension_numbers<[1], [0], [0], [1], [0, 0, 1, 1], [], []>, precision = #tpu.contract_precision<fp32>} : vector<32x16xf32>, vector<16x8xf32>, vector<32x8xf32> -> vector<32x8xf32>
    %21 = vector.shape_cast %20 : vector<32x8xf32> to vector<1x4x8x8xf32>
    %22 = tpu.transpose %21, [0, 1, 3, 2] : vector<1x4x8x8xf32> -> vector<1x4x8x8xf32>
    %cst_5 = arith.constant 0.000000e+00 : f32
    %23 = vector.broadcast %cst_5 : f32 to vector<1x2x8x8xf32>
    %c0_6 = arith.constant 0 : index
    %c0_7 = arith.constant 0 : index
    %c0_8 = arith.constant 0 : index
    %c0_9 = arith.constant 0 : index
    %24 = vector.load %arg2[%c0_6, %c0_7, %c0_8, %c0_9] : memref<1x8x8x8xf32, #tpu.memory_space<vmem>>, vector<1x2x8x8xf32>
    tpu.vector_store %arg2[%c0_6, %c0_7, %c0_8, %c0_9], %23 {strides = array<i32>} : memref<1x8x8x8xf32, #tpu.memory_space<vmem>>, vector<1x2x8x8xf32>,
    %c0_10 = arith.constant 0 : index
    %c6 = arith.constant 6 : index
    %c0_11 = arith.constant 0 : index
    %c0_12 = arith.constant 0 : index
    %25 = vector.load %arg2[%c0_10, %c6, %c0_11, %c0_12] : memref<1x8x8x8xf32, #tpu.memory_space<vmem>>, vector<1x2x8x8xf32>
    tpu.vector_store %arg2[%c0_10, %c6, %c0_11, %c0_12], %23 {strides = array<i32>} : memref<1x8x8x8xf32, #tpu.memory_space<vmem>>, vector<1x2x8x8xf32>,
    %c0_13 = arith.constant 0 : index
    %c2 = arith.constant 2 : index
    %c0_14 = arith.constant 0 : index
    %c0_15 = arith.constant 0 : index
    %26 = vector.load %arg2[%c0_13, %c2, %c0_14, %c0_15] : memref<1x8x8x8xf32, #tpu.memory_space<vmem>>, vector<1x4x8x8xf32>
    tpu.vector_store %arg2[%c0_13, %c2, %c0_14, %c0_15], %22 {strides = array<i32>} : memref<1x8x8x8xf32, #tpu.memory_space<vmem>>, vector<1x4x8x8xf32>,
    return
  }
  func.func @transform_0(%arg0: i32) -> (i32, i32, i32, i32) {
    %c0_i32 = arith.constant 0 : i32
    %c0_i32_0 = arith.constant 0 : i32
    %c0_i32_1 = arith.constant 0 : i32
    %c0_i32_2 = arith.constant 0 : i32
    return %arg0, %c0_i32, %c0_i32_0, %c0_i32_1 : i32, i32, i32, i32
  }
  func.func @transform_1(%arg0: i32) -> (i32, i32, i32, i32) {
    %c0_i32 = arith.constant 0 : i32
    %c0_i32_0 = arith.constant 0 : i32
    %c0_i32_1 = arith.constant 0 : i32
    %c0_i32_2 = arith.constant 0 : i32
    return %arg0, %c0_i32, %c0_i32_0, %c0_i32_1 : i32, i32, i32, i32
  }
}

</mosaic_0001>

<llo_original>
// kernel: tpu_custom_call.1
$region0: #{tpu_custom_call.1}
  #allocation0 [shape = 'u32[]', space=smem, size = 0x4, offset = 0x4, fixed_abs, tag = 'smem constant byte address 0x4 - core index']
  #allocation1 [shape = 'u32[144,128]{1,0:T(1,128)}', space=vmem, size = 0x12000, scoped, tag = 'internal scratch']
  %s0 = inlined_call_operand.hbm [shape: f32[2,4,16,16], index: 0, kind: input, shape index: {}]
  %s1 = inlined_call_operand.hbm [shape: f32[2,8,8,8], index: 1, kind: output, shape index: {}]
  %s2 = sld [smem:[#allocation0]]
  $region41: #{tpu_custom_call.1} parent=0
    _
  %s4 = ssub.s32 1, %s2
  %s5 = scalar_select 0, %s4, %s2
  $region1: #{tpu_custom_call.1} parent=0
    #allocation2 [shape = 'u8[65536]{0}', space=vmem, size = 0x10000, scoped, tag = 'input window, operand 0']
    #allocation3 [shape = 's32[2]{0}', space=sflag, size = 0x8, scoped, tag = 'scoped memory for tpu_custom_call.1']
    #allocation4 [shape = 's32[2]{0}', space=sflag, size = 0x8, scoped, tag = 'scoped memory for tpu_custom_call.1']
    #allocation5 [shape = 'u8[65536]{0}', space=vmem, size = 0x10000, scoped, tag = 'output window, operand 0']
    %6 = vsyncpa [#allocation3], 0
    %s7 = scalar_lea.sflag [#allocation3], 1
    %8 = vsyncpa %s7, 0
    %9 = vsyncpa [#allocation4], 0
    %s10 = scalar_lea.sflag [#allocation4], 1
    %11 = vsyncpa %s10, 0
    loop: start=0, step=1, limit=4
    $region2: #{tpu_custom_call.1} parent=1 // loop_pre_header
      _
    $region3: #{tpu_custom_call.1} parent=1 // loop_header
      %s13 = sphi 0, %s17
      %p14 = scmp.ge.s32.totalorder %s13, 4
      %s23 = sphi 0, %s25
      %s26 = sphi 0, %s23
      %s27 = sphi 0, %s26
      %s43 = sphi 0, %s27
      %s49 = sphi 0, %s51
      %s52 = sphi 0, %s49
      %s53 = sphi 0, %s52
      %s69 = sphi 0, %s53
    $region4: #{tpu_custom_call.1} parent=1 // loop_header_branch
      %16 = sbr.rel (%p14) target = $region8
    $region5: #{tpu_custom_call.1} parent=1 // loop_body
      %s18 = ssub.s32 %s13, 1
      %s19 = ssub.s32 %s13, 2
      %s20 = sadd.s32 %s13, 1
      %s21 = ssub.s32 %s13, %s20
      %p22 = scmp.eq.s32.totalorder %s21, 0
      %s24 = sadd.s32 %s23, 1
      %s25 = scalar_select %p22, %s23, %s24
      %p28 = pneg %p22
      %p29 = scmp.eq.s32.totalorder %s13, 1
      %p30 = por %p28, %p29
      %p31 = scmp.ne.s32.totalorder %s23, %s26
      %p32 = scmp.eq.s32.totalorder %s13, 0
      %p33 = por %p31, %p32
      %p34 = scmp.ne.s32.totalorder %s23, %s26
      %p35 = scmp.eq.s32.totalorder %s18, 1
      %p36 = por %p34, %p35
      %p37 = scmp.ne.s32.totalorder %s26, %s27
      %p38 = scmp.eq.s32.totalorder %s18, 0
      %p39 = por %p37, %p38
      %p40 = scmp.ne.s32.totalorder %s26, %s27
      %p41 = scmp.eq.s32.totalorder %s19, 1
      %p42 = por %p40, %p41
      %p44 = scmp.ne.s32.totalorder %s27, %s43
      %p45 = scmp.eq.s32.totalorder %s19, 0
      %p46 = por %p44, %p45
      %s47 = ssub.s32 %s13, %s20
      %p48 = scmp.eq.s32.totalorder %s47, 0
      %s50 = sadd.s32 %s49, 1
      %s51 = scalar_select %p48, %s49, %s50
      %p54 = pneg %p48
      %p55 = scmp.eq.s32.totalorder %s13, 1
      %p56 = por %p54, %p55
      %p57 = scmp.ne.s32.totalorder %s49, %s52
      %p58 = scmp.eq.s32.totalorder %s13, 0
      %p59 = por %p57, %p58
      %p60 = scmp.ne.s32.totalorder %s49, %s52
      %p61 = scmp.eq.s32.totalorder %s18, 1
      %p62 = por %p60, %p61
      %p63 = scmp.ne.s32.totalorder %s52, %s53
      %p64 = scmp.eq.s32.totalorder %s18, 0
      %p65 = por %p63, %p64
      %p66 = scmp.ne.s32.totalorder %s52, %s53
      %p67 = scmp.eq.s32.totalorder %s19, 1
      %p68 = por %p66, %p67
      %p70 = scmp.ne.s32.totalorder %s53, %s69
      %p71 = scmp.eq.s32.totalorder %s19, 0
      %p72 = por %p70, %p71
      %p73 = scmp.le.s32.totalorder 1, %s13
      %p74 = scmp.lt.s32.totalorder %s13, 3
      %p75 = pnand %p73, %p74
      %p76 = pneg %p75
      // Predicated region
      $region9: #{tpu_custom_call.1} parent=5 // pred_check
        _
      $region10: #{tpu_custom_call.1} parent=5 // pred_check_branch
        %78 = sbr.rel (%p75) target = $region12
      $region11: #{tpu_custom_call.1} parent=5 // pred_region
        %s79 = ssub.s32 %s13, 1
      $region12: #{tpu_custom_call.1} parent=5 // pred_fallthru
        _
      %p80 = scmp.lt.s32.totalorder %s13, 2
      // Predicated region
      $region13: #{tpu_custom_call.1} parent=5 // pred_check
        %p81 = pneg %p80
      $region14: #{tpu_custom_call.1} parent=5 // pred_check_branch
        %83 = sbr.rel (%p81) target = $region16
      $region15: #{tpu_custom_call.1} parent=5 // pred_region
        // Predicated region
        $region17: #{tpu_custom_call.1} parent=15 // pred_check
          %p84 = pneg %p33
        $region18: #{tpu_custom_call.1} parent=15 // pred_check_branch
          %86 = sbr.rel (%p84) target = $region20
        $region19: #{tpu_custom_call.1} parent=15 // pred_region
          %s87 = sand.u32 %s23, 1
          %s88 = scalar_lea.sflag [#allocation3], %s87
          %s89 = sand.u32 %s23, 1
          %s90 = smul.addr %s89, 64
          %s91 = scalar_lea.vmem [#allocation2], %s90
          %s93 = ssub.s32 1024, 1024
          %94 = vsyncadd %s88, %s93
          %s95 = smul.addr %s13, 8
          %s96 = smul.addr %s95, 128
          %s97 = scalar_lea.hbm %s0, %s96
          %s98 = sshll.u32 %s91, 4
          %s99 = int_to_ptr.vmem [resolvable:$true] %s98
          %104 = dma.hbm_to_vmem [thread:$0]  %s97, 1024, %s99, %s88, 128, 128, 8
        $region20: #{tpu_custom_call.1} parent=15 // pred_fallthru
          _
      $region16: #{tpu_custom_call.1} parent=5 // pred_fallthru
        _
      %p105 = scmp.le.s32.totalorder 1, %s13
      %p106 = scmp.lt.s32.totalorder %s13, 3
      %p107 = pnand %p105, %p106
      %p108 = pneg %p107
      // Predicated region
      $region21: #{tpu_custom_call.1} parent=5 // pred_check
        _
      $region22: #{tpu_custom_call.1} parent=5 // pred_check_branch
        %110 = sbr.rel (%p107) target = $region24
      $region23: #{tpu_custom_call.1} parent=5 // pred_region
        %s111 = ssub.s32 %s13, 1
        %s112 = sand.u32 %s26, 1
        %s113 = scalar_lea.sflag [#allocation3], %s112
        %s114 = sand.u32 %s26, 1
        %s115 = smul.addr %s114, 64
        %s116 = scalar_lea.vmem [#allocation2], %s115
        // Predicated region
        $region25: #{tpu_custom_call.1} parent=23 // pred_check
          %p117 = pneg %p39
        $region26: #{tpu_custom_call.1} parent=23 // pred_check_branch
          %119 = sbr.rel (%p117) target = $region28
        $region27: #{tpu_custom_call.1} parent=23 // pred_region
          %120 = dma.done %s113, 1024
        $region28: #{tpu_custom_call.1} parent=23 // pred_fallthru
          _
        %s121 = sand.u32 %s26, 1
        %s122 = scalar_lea.sflag [#allocation3], %s121
        %s123 = sand.u32 %s26, 1
        %s124 = smul.addr %s123, 64
        %s125 = scalar_lea.vmem [#allocation2], %s124
        %p126 = pneg %p39
        %p127 = pneg %p36
        %p128 = pneg %p65
        %p129 = pneg %p62
        %s130 = sand.u32 %s52, 1
        %s131 = scalar_lea.sflag [#allocation4], %s130
        %s132 = sand.u32 %s52, 1
        %s133 = smul.addr %s132, 64
        %s134 = scalar_lea.vmem [#allocation5], %s133
        %v135 = vlaneseq
        %v136 = vshrl.u32 %v135, 7
        %v137 = vadd.s32 %v136, 8
        %v138 = vlaneseq
        %v139 = vand.u32 %v138, 127
        %v140 = vmul.u32 %v139, 2
        %vm141 = vcmp.eq.s32.totalorder %v136, %v140
        %vm142 = vcmp.eq.s32.totalorder %v137, %v140
        %v143 = vsel %vm141, 1, 0
        %v144 = vsel %vm142, 1, 0
        %v145 = vcvt.s32.f32 %v143
        %v146 = vcvt.s32.f32 %v144
        %v147 = vld [vmem:[%s116] sm:$0xff]
        %v148 = vld [vmem:[%s116 + $0x8] sm:$0xff]
        %v149 = vld [vmem:[%s116 + $0x10] sm:$0xff]
        %v150 = vld [vmem:[%s116 + $0x18] sm:$0xff]
        %v151 = vld [vmem:[%s116 + $0x20] sm:$0xff]
        %v152 = vld [vmem:[%s116 + $0x28] sm:$0xff]
        %v153 = vld [vmem:[%s116 + $0x30] sm:$0xff]
        %v154 = vld [vmem:[%s116 + $0x38] sm:$0xff]
        %vm155 = vcmask 130048
        %v157 = vsel %vm155, %v147, 0
        %v160 = vsel %vm155, %v148, 0
        %v163 = vsel %vm155, %v149, 0
        %v166 = vsel %vm155, %v150, 0
        %v169 = vsel %vm155, %v151, 0
        %v172 = vsel %vm155, %v152, 0
        %v175 = vsel %vm155, %v153, 0
        %v178 = vsel %vm155, %v154, 0
        %180 = vmatprep.subr.mxu0 0.0
        %v181 = vand.u32 %v145, 4294901760
        %182 = vmatpush1.msra.mxu0 %v181
        %183 = vmatprep.subr.mxu0 0.0
        %v184 = vand.u32 %v146, 4294901760
        %185 = vmatpush1.msra.mxu0 %v184
        %186 = vmatprep.subr.mxu0 0.0
        %187 = vmatpush1.msra.mxu0 0.0
        %188 = vmatprep.subr.mxu0 0.0
        %189 = vmatpush1.msra.mxu0 0.0
        %190 = vmatprep.subr.mxu0 0.0
        %191 = vmatpush1.msra.mxu0 0.0
        %192 = vmatprep.subr.mxu0 0.0
        %193 = vmatpush1.msra.mxu0 0.0
        %194 = vmatprep.subr.mxu0 0.0
        %195 = vmatpush1.msra.mxu0 0.0
        %196 = vmatprep.subr.mxu0 0.0
        %197 = vmatpush1.msra.mxu0 0.0
        %198 = vmatprep.subr.mxu0 0.0
        %199 = vmatpush1.msra.mxu0 0.0
        %200 = vmatprep.subr.mxu0 0.0
        %201 = vmatpush1.msra.mxu0 0.0
        %202 = vmatprep.subr.mxu0 0.0
        %203 = vmatpush1.msra.mxu0 0.0
        %204 = vmatprep.subr.mxu0 0.0
        %205 = vmatpush1.msra.mxu0 0.0
        %206 = vmatprep.subr.mxu0 0.0
        %207 = vmatpush1.msra.mxu0 0.0
        %208 = vmatprep.subr.mxu0 0.0
        %209 = vmatpush1.msra.mxu0 0.0
        %210 = vmatprep.subr.mxu0 0.0
        %211 = vmatpush1.msra.mxu0 0.0
        %212 = vmatprep.subr.mxu0 0.0
        %213 = vmatpush1.msra.mxu0 0.0
        %214 = vmatprep.subr.mxu0 0.0
        %215 = vmatpush1.msra.mxu0 0.0
        %216 = vmatprep.subr.mxu0 0.0
        %217 = vmatpush1.msra.mxu0 0.0
        %218 = vmatprep.subr.mxu0 0.0
        %219 = vmatpush1.msra.mxu0 0.0
        %220 = vmatprep.subr.mxu0 0.0
        %221 = vmatpush1.msra.mxu0 0.0
        %222 = vmatprep.subr.mxu0 0.0
        %223 = vmatpush1.msra.mxu0 0.0
        %224 = vmatprep.subr.mxu0 0.0
        %225 = vmatpush1.msra.mxu0 0.0
        %226 = vmatprep.subr.mxu0 0.0
        %227 = vmatpush1.msra.mxu0 0.0
        %228 = vmatprep.subr.mxu0 0.0
        %229 = vmatpush1.msra.mxu0 0.0
        %230 = vmatprep.subr.mxu0 0.0
        %231 = vmatpush1.msra.mxu0 0.0
        %232 = vmatprep.subr.mxu0 0.0
        %233 = vmatpush1.msra.mxu0 0.0
        %234 = vmatprep.subr.mxu0 0.0
        %235 = vmatpush1.msra.mxu0 0.0
        %236 = vmatprep.subr.mxu0 0.0
        %237 = vmatpush1.msra.mxu0 0.0
        %238 = vmatprep.subr.mxu0 0.0
        %239 = vmatpush1.msra.mxu0 0.0
        %240 = vmatprep.subr.mxu0 0.0
        %241 = vmatpush1.msra.mxu0 0.0
        %242 = vmatprep.subr.mxu0 0.0
        %243 = vmatpush1.msra.mxu0 0.0
        %244 = vmatprep.subr.mxu0 0.0
        %245 = vmatpush1.msra.mxu0 0.0
        %246 = vmatprep.mubr.f32.mxu0 0.0
        %v247 = vand.u32 %v157, 4294901760
        %v248 = vsub.f32 %v157, %v247
        %v249 = vand.u32 %v248, 4294901760
        %v250 = vsub.f32 %v248, %v249
        %v251 = vand.u32 %v250, 4294901760
        %252 = vmatmul.mubr.f32.gmra.mrb[0].mxu0 %v251
        %v253 = vpop.f32.mrb[0].mxu0
        %v254 = vadd.f32 0.0, %v253
        %v255 = vpop.f32.mrb[0].mxu0
        %256 = vmatprep.mubr.f32.mxu0 0.0
        %v257 = vand.u32 %v160, 4294901760
        %v258 = vsub.f32 %v160, %v257
        %v259 = vand.u32 %v258, 4294901760
        %v260 = vsub.f32 %v258, %v259
        %v261 = vand.u32 %v260, 4294901760
        %262 = vmatmul.mubr.f32.gmra.mrb[0].mxu0 %v261
        %v263 = vpop.f32.mrb[0].mxu0
        %v264 = vadd.f32 0.0, %v263
        %v265 = vpop.f32.mrb[0].mxu0
        %266 = vmatprep.mubr.f32.mxu0 0.0
        %v267 = vand.u32 %v163, 4294901760
        %v268 = vsub.f32 %v163, %v267
        %v269 = vand.u32 %v268, 4294901760
        %v270 = vsub.f32 %v268, %v269
        %v271 = vand.u32 %v270, 4294901760
        %272 = vmatmul.mubr.f32.gmra.mrb[0].mxu0 %v271
        %v273 = vpop.f32.mrb[0].mxu0
        %v274 = vadd.f32 0.0, %v273
        %v275 = vpop.f32.mrb[0].mxu0
        %276 = vmatprep.mubr.f32.mxu0 0.0
        %v277 = vand.u32 %v166, 4294901760
        %v278 = vsub.f32 %v166, %v277
        %v279 = vand.u32 %v278, 4294901760
        %v280 = vsub.f32 %v278, %v279
        %v281 = vand.u32 %v280, 4294901760
        %282 = vmatmul.mubr.f32.gmra.mrb[0].mxu0 %v281
        %v283 = vpop.f32.mrb[0].mxu0
        %v284 = vadd.f32 0.0, %v283
        %v285 = vpop.f32.mrb[0].mxu0
        %286 = vmatprep.mubr.f32.mxu0 0.0
        %v287 = vand.u32 %v169, 4294901760
        %v288 = vsub.f32 %v169, %v287
        %v289 = vand.u32 %v288, 4294901760
        %v290 = vsub.f32 %v288, %v289
        %v291 = vand.u32 %v290, 4294901760
        %292 = vmatmul.mubr.f32.gmra.mrb[0].mxu0 %v291
        %v293 = vpop.f32.mrb[0].mxu0
        %v294 = vadd.f32 0.0, %v293
        %v295 = vpop.f32.mrb[0].mxu0
        %296 = vmatprep.mubr.f32.mxu0 0.0
        %v297 = vand.u32 %v172, 4294901760
        %v298 = vsub.f32 %v172, %v297
        %v299 = vand.u32 %v298, 4294901760
        %v300 = vsub.f32 %v298, %v299
        %v301 = vand.u32 %v300, 4294901760
        %302 = vmatmul.mubr.f32.gmra.mrb[0].mxu0 %v301
        %v303 = vpop.f32.mrb[0].mxu0
        %v304 = vadd.f32 0.0, %v303
        %v305 = vpop.f32.mrb[0].mxu0
        %306 = vmatprep.mubr.f32.mxu0 0.0
        %v307 = vand.u32 %v175, 4294901760
        %v308 = vsub.f32 %v175, %v307
        %v309 = vand.u32 %v308, 4294901760
        %v310 = vsub.f32 %v308, %v309
        %v311 = vand.u32 %v310, 4294901760
        %312 = vmatmul.mubr.f32.gmra.mrb[0].mxu0 %v311
        %v313 = vpop.f32.mrb[0].mxu0
        %v314 = vadd.f32 0.0, %v313
        %v315 = vpop.f32.mrb[0].mxu0
        %316 = vmatprep.mubr.f32.mxu0 0.0
        %v317 = vand.u32 %v178, 4294901760
        %v318 = vsub.f32 %v178, %v317
        %v319 = vand.u32 %v318, 4294901760
        %v320 = vsub.f32 %v318, %v319
        %v321 = vand.u32 %v320, 4294901760
        %322 = vmatmul.mubr.f32.gmra.mrb[0].mxu0 %v321
        %v323 = vpop.f32.mrb[0].mxu0
        %v324 = vadd.f32 0.0, %v323
        %v325 = vpop.f32.mrb[0].mxu0
        %326 = vdwg.mxu0
        %327 = vmatprep.subr.mxu0 0.0
        %v328 = vand.u32 %v145, 4294901760
        %v329 = vsub.f32 %v145, %v328
        %v330 = vand.u32 %v329, 4294901760
        %v331 = vsub.f32 %v329, %v330
        %v332 = vand.u32 %v331, 4294901760
        %333 = vmatpush1.msra.mxu0 %v332
        %334 = vmatprep.subr.mxu0 0.0
        %v335 = vand.u32 %v146, 4294901760
        %v336 = vsub.f32 %v146, %v335
        %v337 = vand.u32 %v336, 4294901760
        %v338 = vsub.f32 %v336, %v337
        %v339 = vand.u32 %v338, 4294901760
        %340 = vmatpush1.msra.mxu0 %v339
        %341 = vmatprep.subr.mxu0 0.0
        %342 = vmatpush1.msra.mxu0 0.0
        %343 = vmatprep.subr.mxu0 0.0
        %344 = vmatpush1.msra.mxu0 0.0
        %345 = vmatprep.subr.mxu0 0.0
        %346 = vmatpush1.msra.mxu0 0.0
        %347 = vmatprep.subr.mxu0 0.0
        %348 = vmatpush1.msra.mxu0 0.0
        %349 = vmatprep.subr.mxu0 0.0
        %350 = vmatpush1.msra.mxu0 0.0
        %351 = vmatprep.subr.mxu0 0.0
        %352 = vmatpush1.msra.mxu0 0.0
        %353 = vmatprep.subr.mxu0 0.0
        %354 = vmatpush1.msra.mxu0 0.0
        %355 = vmatprep.subr.mxu0 0.0
        %356 = vmatpush1.msra.mxu0 0.0
        %357 = vmatprep.subr.mxu0 0.0
        %358 = vmatpush1.msra.mxu0 0.0
        %359 = vmatprep.subr.mxu0 0.0
        %360 = vmatpush1.msra.mxu0 0.0
        %361 = vmatprep.subr.mxu0 0.0
        %362 = vmatpush1.msra.mxu0 0.0
        %363 = vmatprep.subr.mxu0 0.0
        %364 = vmatpush1.msra.mxu0 0.0
        %365 = vmatprep.subr.mxu0 0.0
        %366 = vmatpush1.msra.mxu0 0.0
        %367 = vmatprep.subr.mxu0 0.0
        %368 = vmatpush1.msra.mxu0 0.0
        %369 = vmatprep.subr.mxu0 0.0
        %370 = vmatpush1.msra.mxu0 0.0
        %371 = vmatprep.subr.mxu0 0.0
        %372 = vmatpush1.msra.mxu0 0.0
        %373 = vmatprep.subr.mxu0 0.0
        %374 = vmatpush1.msra.mxu0 0.0
        %375 = vmatprep.subr.mxu0 0.0
        %376 = vmatpush1.msra.mxu0 0.0
        %377 = vmatprep.subr.mxu0 0.0
        %378 = vmatpush1.msra.mxu0 0.0
        %379 = vmatprep.subr.mxu0 0.0
        %380 = vmatpush1.msra.mxu0 0.0
        %381 = vmatprep.subr.mxu0 0.0
        %382 = vmatpush1.msra.mxu0 0.0
        %383 = vmatprep.subr.mxu0 0.0
        %384 = vmatpush1.msra.mxu0 0.0
        %385 = vmatprep.subr.mxu0 0.0
        %386 = vmatpush1.msra.mxu0 0.0
        %387 = vmatprep.subr.mxu0 0.0
        %388 = vmatpush1.msra.mxu0 0.0
        %389 = vmatprep.subr.mxu0 0.0
        %390 = vmatpush1.msra.mxu0 0.0
        %391 = vmatprep.subr.mxu0 0.0
        %392 = vmatpush1.msra.mxu0 0.0
        %393 = vmatprep.subr.mxu0 0.0
        %394 = vmatpush1.msra.mxu0 0.0
        %395 = vmatprep.subr.mxu0 0.0
        %396 = vmatpush1.msra.mxu0 0.0
        %397 = vmatprep.subr.mxu0 0.0
        %398 = vmatpush1.msra.mxu0 0.0
        %399 = vmatprep.subr.mxu0 0.0
        %400 = vmatpush1.msra.mxu0 0.0
        %401 = vmatprep.mubr.f32.mxu0 0.0
        %v402 = vand.u32 %v157, 4294901760
        %403 = vmatmul.mubr.f32.gmra.mrb[0].mxu0 %v402
        %v404 = vpop.f32.mrb[0].mxu0
        %v405 = vadd.f32 %v254, %v404
        %v406 = vpop.f32.mrb[0].mxu0
        %407 = vmatprep.mubr.f32.mxu0 0.0
        %v408 = vand.u32 %v160, 4294901760
        %409 = vmatmul.mubr.f32.gmra.mrb[0].mxu0 %v408
        %v410 = vpop.f32.mrb[0].mxu0
        %v411 = vadd.f32 %v264, %v410
        %v412 = vpop.f32.mrb[0].mxu0
        %413 = vmatprep.mubr.f32.mxu0 0.0
        %v414 = vand.u32 %v163, 4294901760
        %415 = vmatmul.mubr.f32.gmra.mrb[0].mxu0 %v414
        %v416 = vpop.f32.mrb[0].mxu0
        %v417 = vadd.f32 %v274, %v416
        %v418 = vpop.f32.mrb[0].mxu0
        %419 = vmatprep.mubr.f32.mxu0 0.0
        %v420 = vand.u32 %v166, 4294901760
        %421 = vmatmul.mubr.f32.gmra.mrb[0].mxu0 %v420
        %v422 = vpop.f32.mrb[0].mxu0
        %v423 = vadd.f32 %v284, %v422
        %v424 = vpop.f32.mrb[0].mxu0
        %425 = vmatprep.mubr.f32.mxu0 0.0
        %v426 = vand.u32 %v169, 4294901760
        %427 = vmatmul.mubr.f32.gmra.mrb[0].mxu0 %v426
        %v428 = vpop.f32.mrb[0].mxu0
        %v429 = vadd.f32 %v294, %v428
        %v430 = vpop.f32.mrb[0].mxu0
        %431 = vmatprep.mubr.f32.mxu0 0.0
        %v432 = vand.u32 %v172, 4294901760
        %433 = vmatmul.mubr.f32.gmra.mrb[0].mxu0 %v432
        %v434 = vpop.f32.mrb[0].mxu0
        %v435 = vadd.f32 %v304, %v434
        %v436 = vpop.f32.mrb[0].mxu0
        %437 = vmatprep.mubr.f32.mxu0 0.0
        %v438 = vand.u32 %v175, 4294901760
        %439 = vmatmul.mubr.f32.gmra.mrb[0].mxu0 %v438
        %v440 = vpop.f32.mrb[0].mxu0
        %v441 = vadd.f32 %v314, %v440
        %v442 = vpop.f32.mrb[0].mxu0
        %443 = vmatprep.mubr.f32.mxu0 0.0
        %v444 = vand.u32 %v178, 4294901760
        %445 = vmatmul.mubr.f32.gmra.mrb[0].mxu0 %v444
        %v446 = vpop.f32.mrb[0].mxu0
        %v447 = vadd.f32 %v324, %v446
        %v448 = vpop.f32.mrb[0].mxu0
        %449 = vdwg.mxu0
        %450 = vmatprep.subr.mxu0 0.0
        %v451 = vand.u32 %v145, 4294901760
        %v452 = vsub.f32 %v145, %v451
        %453 = vmatpush1.msra.mxu0 %v452
        %454 = vmatprep.subr.mxu0 0.0
        %v455 = vand.u32 %v146, 4294901760
        %v456 = vsub.f32 %v146, %v455
        %457 = vmatpush1.msra.mxu0 %v456
        %458 = vmatprep.subr.mxu0 0.0
        %459 = vmatpush1.msra.mxu0 0.0
        %460 = vmatprep.subr.mxu0 0.0
        %461 = vmatpush1.msra.mxu0 0.0
        %462 = vmatprep.subr.mxu0 0.0
        %463 = vmatpush1.msra.mxu0 0.0
        %464 = vmatprep.subr.mxu0 0.0
        %465 = vmatpush1.msra.mxu0 0.0
        %466 = vmatprep.subr.mxu0 0.0
        %467 = vmatpush1.msra.mxu0 0.0
        %468 = vmatprep.subr.mxu0 0.0
        %469 = vmatpush1.msra.mxu0 0.0
        %470 = vmatprep.subr.mxu0 0.0
        %471 = vmatpush1.msra.mxu0 0.0
        %472 = vmatprep.subr.mxu0 0.0
        %473 = vmatpush1.msra.mxu0 0.0
        %474 = vmatprep.subr.mxu0 0.0
        %475 = vmatpush1.msra.mxu0 0.0
        %476 = vmatprep.subr.mxu0 0.0
        %477 = vmatpush1.msra.mxu0 0.0
        %478 = vmatprep.subr.mxu0 0.0
        %479 = vmatpush1.msra.mxu0 0.0
        %480 = vmatprep.subr.mxu0 0.0
        %481 = vmatpush1.msra.mxu0 0.0
        %482 = vmatprep.subr.mxu0 0.0
        %483 = vmatpush1.msra.mxu0 0.0
        %484 = vmatprep.subr.mxu0 0.0
        %485 = vmatpush1.msra.mxu0 0.0
        %486 = vmatprep.subr.mxu0 0.0
        %487 = vmatpush1.msra.mxu0 0.0
        %488 = vmatprep.subr.mxu0 0.0
        %489 = vmatpush1.msra.mxu0 0.0
        %490 = vmatprep.subr.mxu0 0.0
        %491 = vmatpush1.msra.mxu0 0.0
        %492 = vmatprep.subr.mxu0 0.0
        %493 = vmatpush1.msra.mxu0 0.0
        %494 = vmatprep.subr.mxu0 0.0
        %495 = vmatpush1.msra.mxu0 0.0
        %496 = vmatprep.subr.mxu0 0.0
        %497 = vmatpush1.msra.mxu0 0.0
        %498 = vmatprep.subr.mxu0 0.0
        %499 = vmatpush1.msra.mxu0 0.0
        %500 = vmatprep.subr.mxu0 0.0
        %501 = vmatpush1.msra.mxu0 0.0
        %502 = vmatprep.subr.mxu0 0.0
        %503 = vmatpush1.msra.mxu0 0.0
        %504 = vmatprep.subr.mxu0 0.0
        %505 = vmatpush1.msra.mxu0 0.0
        %506 = vmatprep.subr.mxu0 0.0
        %507 = vmatpush1.msra.mxu0 0.0
        %508 = vmatprep.subr.mxu0 0.0
        %509 = vmatpush1.msra.mxu0 0.0
        %510 = vmatprep.subr.mxu0 0.0
        %511 = vmatpush1.msra.mxu0 0.0
        %512 = vmatprep.subr.mxu0 0.0
        %513 = vmatpush1.msra.mxu0 0.0
        %514 = vmatprep.subr.mxu0 0.0
        %515 = vmatpush1.msra.mxu0 0.0
        %516 = vmatprep.subr.mxu0 0.0
        %517 = vmatpush1.msra.mxu0 0.0
        %518 = vmatprep.mubr.f32.mxu0 0.0
        %v519 = vand.u32 %v157, 4294901760
        %v520 = vsub.f32 %v157, %v519
        %521 = vmatmul.mubr.f32.gmra.mrb[0].mxu0 %v520
        %v522 = vpop.f32.mrb[0].mxu0
        %v523 = vadd.f32 %v405, %v522
        %v524 = vpop.f32.mrb[0].mxu0
        %525 = vmatprep.mubr.f32.mxu0 0.0
        %v526 = vand.u32 %v160, 4294901760
        %v527 = vsub.f32 %v160, %v526
        %528 = vmatmul.mubr.f32.gmra.mrb[0].mxu0 %v527
        %v529 = vpop.f32.mrb[0].mxu0
        %v530 = vadd.f32 %v411, %v529
        %v531 = vpop.f32.mrb[0].mxu0
        %532 = vmatprep.mubr.f32.mxu0 0.0
        %v533 = vand.u32 %v163, 4294901760
        %v534 = vsub.f32 %v163, %v533
        %535 = vmatmul.mubr.f32.gmra.mrb[0].mxu0 %v534
        %v536 = vpop.f32.mrb[0].mxu0
        %v537 = vadd.f32 %v417, %v536
        %v538 = vpop.f32.mrb[0].mxu0
        %539 = vmatprep.mubr.f32.mxu0 0.0
        %v540 = vand.u32 %v166, 4294901760
        %v541 = vsub.f32 %v166, %v540
        %542 = vmatmul.mubr.f32.gmra.mrb[0].mxu0 %v541
        %v543 = vpop.f32.mrb[0].mxu0
        %v544 = vadd.f32 %v423, %v543
        %v545 = vpop.f32.mrb[0].mxu0
        %546 = vmatprep.mubr.f32.mxu0 0.0
        %v547 = vand.u32 %v169, 4294901760
        %v548 = vsub.f32 %v169, %v547
        %549 = vmatmul.mubr.f32.gmra.mrb[0].mxu0 %v548
        %v550 = vpop.f32.mrb[0].mxu0
        %v551 = vadd.f32 %v429, %v550
        %v552 = vpop.f32.mrb[0].mxu0
        %553 = vmatprep.mubr.f32.mxu0 0.0
        %v554 = vand.u32 %v172, 4294901760
        %v555 = vsub.f32 %v172, %v554
        %556 = vmatmul.mubr.f32.gmra.mrb[0].mxu0 %v555
        %v557 = vpop.f32.mrb[0].mxu0
        %v558 = vadd.f32 %v435, %v557
        %v559 = vpop.f32.mrb[0].mxu0
        %560 = vmatprep.mubr.f32.mxu0 0.0
        %v561 = vand.u32 %v175, 4294901760
        %v562 = vsub.f32 %v175, %v561
        %563 = vmatmul.mubr.f32.gmra.mrb[0].mxu0 %v562
        %v564 = vpop.f32.mrb[0].mxu0
        %v565 = vadd.f32 %v441, %v564
        %v566 = vpop.f32.mrb[0].mxu0
        %567 = vmatprep.mubr.f32.mxu0 0.0
        %v568 = vand.u32 %v178, 4294901760
        %v569 = vsub.f32 %v178, %v568
        %570 = vmatmul.mubr.f32.gmra.mrb[0].mxu0 %v569
        %v571 = vpop.f32.mrb[0].mxu0
        %v572 = vadd.f32 %v447, %v571
        %v573 = vpop.f32.mrb[0].mxu0
        %574 = vdwg.mxu0
        %575 = vmatprep.subr.mxu0 0.0
        %v576 = vand.u32 %v145, 4294901760
        %577 = vmatpush1.msra.mxu0 %v576
        %578 = vmatprep.subr.mxu0 0.0
        %v579 = vand.u32 %v146, 4294901760
        %580 = vmatpush1.msra.mxu0 %v579
        %581 = vmatprep.subr.mxu0 0.0
        %582 = vmatpush1.msra.mxu0 0.0
        %583 = vmatprep.subr.mxu0 0.0
        %584 = vmatpush1.msra.mxu0 0.0
        %585 = vmatprep.subr.mxu0 0.0
        %586 = vmatpush1.msra.mxu0 0.0
        %587 = vmatprep.subr.mxu0 0.0
        %588 = vmatpush1.msra.mxu0 0.0
        %589 = vmatprep.subr.mxu0 0.0
        %590 = vmatpush1.msra.mxu0 0.0
        %591 = vmatprep.subr.mxu0 0.0
        %592 = vmatpush1.msra.mxu0 0.0
        %593 = vmatprep.subr.mxu0 0.0
        %594 = vmatpush1.msra.mxu0 0.0
        %595 = vmatprep.subr.mxu0 0.0
        %596 = vmatpush1.msra.mxu0 0.0
        %597 = vmatprep.subr.mxu0 0.0
        %598 = vmatpush1.msra.mxu0 0.0
        %599 = vmatprep.subr.mxu0 0.0
        %600 = vmatpush1.msra.mxu0 0.0
        %601 = vmatprep.subr.mxu0 0.0
        %602 = vmatpush1.msra.mxu0 0.0
        %603 = vmatprep.subr.mxu0 0.0
        %604 = vmatpush1.msra.mxu0 0.0
        %605 = vmatprep.subr.mxu0 0.0
        %606 = vmatpush1.msra.mxu0 0.0
        %607 = vmatprep.subr.mxu0 0.0
        %608 = vmatpush1.msra.mxu0 0.0
        %609 = vmatprep.subr.mxu0 0.0
        %610 = vmatpush1.msra.mxu0 0.0
        %611 = vmatprep.subr.mxu0 0.0
        %612 = vmatpush1.msra.mxu0 0.0
        %613 = vmatprep.subr.mxu0 0.0
        %614 = vmatpush1.msra.mxu0 0.0
        %615 = vmatprep.subr.mxu0 0.0
        %616 = vmatpush1.msra.mxu0 0.0
        %617 = vmatprep.subr.mxu0 0.0
        %618 = vmatpush1.msra.mxu0 0.0
        %619 = vmatprep.subr.mxu0 0.0
        %620 = vmatpush1.msra.mxu0 0.0
        %621 = vmatprep.subr.mxu0 0.0
        %622 = vmatpush1.msra.mxu0 0.0
        %623 = vmatprep.subr.mxu0 0.0
        %624 = vmatpush1.msra.mxu0 0.0
        %625 = vmatprep.subr.mxu0 0.0
        %626 = vmatpush1.msra.mxu0 0.0
        %627 = vmatprep.subr.mxu0 0.0
        %628 = vmatpush1.msra.mxu0 0.0
        %629 = vmatprep.subr.mxu0 0.0
        %630 = vmatpush1.msra.mxu0 0.0
        %631 = vmatprep.subr.mxu0 0.0
        %632 = vmatpush1.msra.mxu0 0.0
        %633 = vmatprep.subr.mxu0 0.0
        %634 = vmatpush1.msra.mxu0 0.0
        %635 = vmatprep.subr.mxu0 0.0
        %636 = vmatpush1.msra.mxu0 0.0
        %637 = vmatprep.subr.mxu0 0.0
        %638 = vmatpush1.msra.mxu0 0.0
        %639 = vmatprep.subr.mxu0 0.0
        %640 = vmatpush1.msra.mxu0 0.0
        %641 = vmatprep.mubr.f32.mxu0 0.0
        %v642 = vand.u32 %v157, 4294901760
        %v643 = vsub.f32 %v157, %v642
        %v644 = vand.u32 %v643, 4294901760
        %645 = vmatmul.mubr.f32.gmra.mrb[0].mxu0 %v644
        %v646 = vpop.f32.mrb[0].mxu0
        %v647 = vadd.f32 %v523, %v646
        %v648 = vpop.f32.mrb[0].mxu0
        %649 = vmatprep.mubr.f32.mxu0 0.0
        %v650 = vand.u32 %v160, 4294901760
        %v651 = vsub.f32 %v160, %v650
        %v652 = vand.u32 %v651, 4294901760
        %653 = vmatmul.mubr.f32.gmra.mrb[0].mxu0 %v652
        %v654 = vpop.f32.mrb[0].mxu0
        %v655 = vadd.f32 %v530, %v654
        %v656 = vpop.f32.mrb[0].mxu0
        %657 = vmatprep.mubr.f32.mxu0 0.0
        %v658 = vand.u32 %v163, 4294901760
        %v659 = vsub.f32 %v163, %v658
        %v660 = vand.u32 %v659, 4294901760
        %661 = vmatmul.mubr.f32.gmra.mrb[0].mxu0 %v660
        %v662 = vpop.f32.mrb[0].mxu0
        %v663 = vadd.f32 %v537, %v662
        %v664 = vpop.f32.mrb[0].mxu0
        %665 = vmatprep.mubr.f32.mxu0 0.0
        %v666 = vand.u32 %v166, 4294901760
        %v667 = vsub.f32 %v166, %v666
        %v668 = vand.u32 %v667, 4294901760
        %669 = vmatmul.mubr.f32.gmra.mrb[0].mxu0 %v668
        %v670 = vpop.f32.mrb[0].mxu0
        %v671 = vadd.f32 %v544, %v670
        %v672 = vpop.f32.mrb[0].mxu0
        %673 = vmatprep.mubr.f32.mxu0 0.0
        %v674 = vand.u32 %v169, 4294901760
        %v675 = vsub.f32 %v169, %v674
        %v676 = vand.u32 %v675, 4294901760
        %677 = vmatmul.mubr.f32.gmra.mrb[0].mxu0 %v676
        %v678 = vpop.f32.mrb[0].mxu0
        %v679 = vadd.f32 %v551, %v678
        %v680 = vpop.f32.mrb[0].mxu0
        %681 = vmatprep.mubr.f32.mxu0 0.0
        %v682 = vand.u32 %v172, 4294901760
        %v683 = vsub.f32 %v172, %v682
        %v684 = vand.u32 %v683, 4294901760
        %685 = vmatmul.mubr.f32.gmra.mrb[0].mxu0 %v684
        %v686 = vpop.f32.mrb[0].mxu0
        %v687 = vadd.f32 %v558, %v686
        %v688 = vpop.f32.mrb[0].mxu0
        %689 = vmatprep.mubr.f32.mxu0 0.0
        %v690 = vand.u32 %v175, 4294901760
        %v691 = vsub.f32 %v175, %v690
        %v692 = vand.u32 %v691, 4294901760
        %693 = vmatmul.mubr.f32.gmra.mrb[0].mxu0 %v692
        %v694 = vpop.f32.mrb[0].mxu0
        %v695 = vadd.f32 %v565, %v694
        %v696 = vpop.f32.mrb[0].mxu0
        %697 = vmatprep.mubr.f32.mxu0 0.0
        %v698 = vand.u32 %v178, 4294901760
        %v699 = vsub.f32 %v178, %v698
        %v700 = vand.u32 %v699, 4294901760
        %701 = vmatmul.mubr.f32.gmra.mrb[0].mxu0 %v700
        %v702 = vpop.f32.mrb[0].mxu0
        %v703 = vadd.f32 %v572, %v702
        %v704 = vpop.f32.mrb[0].mxu0
        %705 = vdwg.mxu0
        %706 = vmatprep.subr.mxu0 0.0
        %v707 = vand.u32 %v145, 4294901760
        %v708 = vsub.f32 %v145, %v707
        %v709 = vand.u32 %v708, 4294901760
        %710 = vmatpush1.msra.mxu0 %v709
        %711 = vmatprep.subr.mxu0 0.0
        %v712 = vand.u32 %v146, 4294901760
        %v713 = vsub.f32 %v146, %v712
        %v714 = vand.u32 %v713, 4294901760
        %715 = vmatpush1.msra.mxu0 %v714
        %716 = vmatprep.subr.mxu0 0.0
        %717 = vmatpush1.msra.mxu0 0.0
        %718 = vmatprep.subr.mxu0 0.0
        %719 = vmatpush1.msra.mxu0 0.0
        %720 = vmatprep.subr.mxu0 0.0
        %721 = vmatpush1.msra.mxu0 0.0
        %722 = vmatprep.subr.mxu0 0.0
        %723 = vmatpush1.msra.mxu0 0.0
        %724 = vmatprep.subr.mxu0 0.0
        %725 = vmatpush1.msra.mxu0 0.0
        %726 = vmatprep.subr.mxu0 0.0
        %727 = vmatpush1.msra.mxu0 0.0
        %728 = vmatprep.subr.mxu0 0.0
        %729 = vmatpush1.msra.mxu0 0.0
        %730 = vmatprep.subr.mxu0 0.0
        %731 = vmatpush1.msra.mxu0 0.0
        %732 = vmatprep.subr.mxu0 0.0
        %733 = vmatpush1.msra.mxu0 0.0
        %734 = vmatprep.subr.mxu0 0.0
        %735 = vmatpush1.msra.mxu0 0.0
        %736 = vmatprep.subr.mxu0 0.0
        %737 = vmatpush1.msra.mxu0 0.0
        %738 = vmatprep.subr.mxu0 0.0
        %739 = vmatpush1.msra.mxu0 0.0
        %740 = vmatprep.subr.mxu0 0.0
        %741 = vmatpush1.msra.mxu0 0.0
        %742 = vmatprep.subr.mxu0 0.0
        %743 = vmatpush1.msra.mxu0 0.0
        %744 = vmatprep.subr.mxu0 0.0
        %745 = vmatpush1.msra.mxu0 0.0
        %746 = vmatprep.subr.mxu0 0.0
        %747 = vmatpush1.msra.mxu0 0.0
        %748 = vmatprep.subr.mxu0 0.0
        %749 = vmatpush1.msra.mxu0 0.0
        %750 = vmatprep.subr.mxu0 0.0
        %751 = vmatpush1.msra.mxu0 0.0
        %752 = vmatprep.subr.mxu0 0.0
        %753 = vmatpush1.msra.mxu0 0.0
        %754 = vmatprep.subr.mxu0 0.0
        %755 = vmatpush1.msra.mxu0 0.0
        %756 = vmatprep.subr.mxu0 0.0
        %757 = vmatpush1.msra.mxu0 0.0
        %758 = vmatprep.subr.mxu0 0.0
        %759 = vmatpush1.msra.mxu0 0.0
        %760 = vmatprep.subr.mxu0 0.0
        %761 = vmatpush1.msra.mxu0 0.0
        %762 = vmatprep.subr.mxu0 0.0
        %763 = vmatpush1.msra.mxu0 0.0
        %764 = vmatprep.subr.mxu0 0.0
        %765 = vmatpush1.msra.mxu0 0.0
        %766 = vmatprep.subr.mxu0 0.0
        %767 = vmatpush1.msra.mxu0 0.0
        %768 = vmatprep.subr.mxu0 0.0
        %769 = vmatpush1.msra.mxu0 0.0
        %770 = vmatprep.subr.mxu0 0.0
        %771 = vmatpush1.msra.mxu0 0.0
        %772 = vmatprep.subr.mxu0 0.0
        %773 = vmatpush1.msra.mxu0 0.0
        %774 = vmatprep.subr.mxu0 0.0
        %775 = vmatpush1.msra.mxu0 0.0
        %776 = vmatprep.mubr.f32.mxu0 0.0
        %v777 = vand.u32 %v157, 4294901760
        %778 = vmatmul.mubr.f32.gmra.mrb[0].mxu0 %v777
        %v779 = vpop.f32.mrb[0].mxu0
        %v780 = vadd.f32 %v647, %v779
        %v781 = vpop.f32.mrb[0].mxu0
        %782 = vmatprep.mubr.f32.mxu0 0.0
        %v783 = vand.u32 %v160, 4294901760
        %784 = vmatmul.mubr.f32.gmra.mrb[0].mxu0 %v783
        %v785 = vpop.f32.mrb[0].mxu0
        %v786 = vadd.f32 %v655, %v785
        %v787 = vpop.f32.mrb[0].mxu0
        %788 = vmatprep.mubr.f32.mxu0 0.0
        %v789 = vand.u32 %v163, 4294901760
        %790 = vmatmul.mubr.f32.gmra.mrb[0].mxu0 %v789
        %v791 = vpop.f32.mrb[0].mxu0
        %v792 = vadd.f32 %v663, %v791
        %v793 = vpop.f32.mrb[0].mxu0
        %794 = vmatprep.mubr.f32.mxu0 0.0
        %v795 = vand.u32 %v166, 4294901760
        %796 = vmatmul.mubr.f32.gmra.mrb[0].mxu0 %v795
        %v797 = vpop.f32.mrb[0].mxu0
        %v798 = vadd.f32 %v671, %v797
        %v799 = vpop.f32.mrb[0].mxu0
        %800 = vmatprep.mubr.f32.mxu0 0.0
        %v801 = vand.u32 %v169, 4294901760
        %802 = vmatmul.mubr.f32.gmra.mrb[0].mxu0 %v801
        %v803 = vpop.f32.mrb[0].mxu0
        %v804 = vadd.f32 %v679, %v803
        %v805 = vpop.f32.mrb[0].mxu0
        %806 = vmatprep.mubr.f32.mxu0 0.0
        %v807 = vand.u32 %v172, 4294901760
        %808 = vmatmul.mubr.f32.gmra.mrb[0].mxu0 %v807
        %v809 = vpop.f32.mrb[0].mxu0
        %v810 = vadd.f32 %v687, %v809
        %v811 = vpop.f32.mrb[0].mxu0
        %812 = vmatprep.mubr.f32.mxu0 0.0
        %v813 = vand.u32 %v175, 4294901760
        %814 = vmatmul.mubr.f32.gmra.mrb[0].mxu0 %v813
        %v815 = vpop.f32.mrb[0].mxu0
        %v816 = vadd.f32 %v695, %v815
        %v817 = vpop.f32.mrb[0].mxu0
        %818 = vmatprep.mubr.f32.mxu0 0.0
        %v819 = vand.u32 %v178, 4294901760
        %820 = vmatmul.mubr.f32.gmra.mrb[0].mxu0 %v819
        %v821 = vpop.f32.mrb[0].mxu0
        %v822 = vadd.f32 %v703, %v821
        %v823 = vpop.f32.mrb[0].mxu0
        %824 = vdwg.mxu0
        %825 = vmatprep.subr.mxu0 0.0
        %v826 = vand.u32 %v145, 4294901760
        %827 = vmatpush1.msra.mxu0 %v826
        %828 = vmatprep.subr.mxu0 0.0
        %v829 = vand.u32 %v146, 4294901760
        %830 = vmatpush1.msra.mxu0 %v829
        %831 = vmatprep.subr.mxu0 0.0
        %832 = vmatpush1.msra.mxu0 0.0
        %833 = vmatprep.subr.mxu0 0.0
        %834 = vmatpush1.msra.mxu0 0.0
        %835 = vmatprep.subr.mxu0 0.0
        %836 = vmatpush1.msra.mxu0 0.0
        %837 = vmatprep.subr.mxu0 0.0
        %838 = vmatpush1.msra.mxu0 0.0
        %839 = vmatprep.subr.mxu0 0.0
        %840 = vmatpush1.msra.mxu0 0.0
        %841 = vmatprep.subr.mxu0 0.0
        %842 = vmatpush1.msra.mxu0 0.0
        %843 = vmatprep.subr.mxu0 0.0
        %844 = vmatpush1.msra.mxu0 0.0
        %845 = vmatprep.subr.mxu0 0.0
        %846 = vmatpush1.msra.mxu0 0.0
        %847 = vmatprep.subr.mxu0 0.0
        %848 = vmatpush1.msra.mxu0 0.0
        %849 = vmatprep.subr.mxu0 0.0
        %850 = vmatpush1.msra.mxu0 0.0
        %851 = vmatprep.subr.mxu0 0.0
        %852 = vmatpush1.msra.mxu0 0.0
        %853 = vmatprep.subr.mxu0 0.0
        %854 = vmatpush1.msra.mxu0 0.0
        %855 = vmatprep.subr.mxu0 0.0
        %856 = vmatpush1.msra.mxu0 0.0
        %857 = vmatprep.subr.mxu0 0.0
        %858 = vmatpush1.msra.mxu0 0.0
        %859 = vmatprep.subr.mxu0 0.0
        %860 = vmatpush1.msra.mxu0 0.0
        %861 = vmatprep.subr.mxu0 0.0
        %862 = vmatpush1.msra.mxu0 0.0
        %863 = vmatprep.subr.mxu0 0.0
        %864 = vmatpush1.msra.mxu0 0.0
        %865 = vmatprep.subr.mxu0 0.0
        %866 = vmatpush1.msra.mxu0 0.0
        %867 = vmatprep.subr.mxu0 0.0
        %868 = vmatpush1.msra.mxu0 0.0
        %869 = vmatprep.subr.mxu0 0.0
        %870 = vmatpush1.msra.mxu0 0.0
        %871 = vmatprep.subr.mxu0 0.0
        %872 = vmatpush1.msra.mxu0 0.0
        %873 = vmatprep.subr.mxu0 0.0
        %874 = vmatpush1.msra.mxu0 0.0
        %875 = vmatprep.subr.mxu0 0.0
        %876 = vmatpush1.msra.mxu0 0.0
        %877 = vmatprep.subr.mxu0 0.0
        %878 = vmatpush1.msra.mxu0 0.0
        %879 = vmatprep.subr.mxu0 0.0
        %880 = vmatpush1.msra.mxu0 0.0
        %881 = vmatprep.subr.mxu0 0.0
        %882 = vmatpush1.msra.mxu0 0.0
        %883 = vmatprep.subr.mxu0 0.0
        %884 = vmatpush1.msra.mxu0 0.0
        %885 = vmatprep.subr.mxu0 0.0
        %886 = vmatpush1.msra.mxu0 0.0
        %887 = vmatprep.subr.mxu0 0.0
        %888 = vmatpush1.msra.mxu0 0.0
        %889 = vmatprep.subr.mxu0 0.0
        %890 = vmatpush1.msra.mxu0 0.0
        %891 = vmatprep.mubr.f32.mxu0 0.0
        %v892 = vand.u32 %v157, 4294901760
        %893 = vmatmul.mubr.f32.gmra.mrb[0].mxu0 %v892
        %v894 = vpop.f32.mrb[0].mxu0
        %v895 = vadd.f32 %v780, %v894
        %v896 = vpop.f32.mrb[0].mxu0
        %897 = vmatprep.mubr.f32.mxu0 0.0
        %v898 = vand.u32 %v160, 4294901760
        %899 = vmatmul.mubr.f32.gmra.mrb[0].mxu0 %v898
        %v900 = vpop.f32.mrb[0].mxu0
        %v901 = vadd.f32 %v786, %v900
        %v902 = vpop.f32.mrb[0].mxu0
        %903 = vmatprep.mubr.f32.mxu0 0.0
        %v904 = vand.u32 %v163, 4294901760
        %905 = vmatmul.mubr.f32.gmra.mrb[0].mxu0 %v904
        %v906 = vpop.f32.mrb[0].mxu0
        %v907 = vadd.f32 %v792, %v906
        %v908 = vpop.f32.mrb[0].mxu0
        %909 = vmatprep.mubr.f32.mxu0 0.0
        %v910 = vand.u32 %v166, 4294901760
        %911 = vmatmul.mubr.f32.gmra.mrb[0].mxu0 %v910
        %v912 = vpop.f32.mrb[0].mxu0
        %v913 = vadd.f32 %v798, %v912
        %v914 = vpop.f32.mrb[0].mxu0
        %915 = vmatprep.mubr.f32.mxu0 0.0
        %v916 = vand.u32 %v169, 4294901760
        %917 = vmatmul.mubr.f32.gmra.mrb[0].mxu0 %v916
        %v918 = vpop.f32.mrb[0].mxu0
        %v919 = vadd.f32 %v804, %v918
        %v920 = vpop.f32.mrb[0].mxu0
        %921 = vmatprep.mubr.f32.mxu0 0.0
        %v922 = vand.u32 %v172, 4294901760
        %923 = vmatmul.mubr.f32.gmra.mrb[0].mxu0 %v922
        %v924 = vpop.f32.mrb[0].mxu0
        %v925 = vadd.f32 %v810, %v924
        %v926 = vpop.f32.mrb[0].mxu0
        %927 = vmatprep.mubr.f32.mxu0 0.0
        %v928 = vand.u32 %v175, 4294901760
        %929 = vmatmul.mubr.f32.gmra.mrb[0].mxu0 %v928
        %v930 = vpop.f32.mrb[0].mxu0
        %v931 = vadd.f32 %v816, %v930
        %v932 = vpop.f32.mrb[0].mxu0
        %933 = vmatprep.mubr.f32.mxu0 0.0
        %v934 = vand.u32 %v178, 4294901760
        %935 = vmatmul.mubr.f32.gmra.mrb[0].mxu0 %v934
        %v936 = vpop.f32.mrb[0].mxu0
        %v937 = vadd.f32 %v822, %v936
        %v938 = vpop.f32.mrb[0].mxu0
        %939 = vdwg.mxu0
        %940 = vxpose.xlu0.b32.start [1/16] %v895, 128
        %941 = vxpose.xlu0.b32.cont [2/16] %v901, 128
        %942 = vxpose.xlu0.b32.cont [3/16] 0.0, 128
        %943 = vxpose.xlu0.b32.cont [4/16] 0.0, 128
        %944 = vxpose.xlu0.b32.cont [5/16] 0.0, 128
        %945 = vxpose.xlu0.b32.cont [6/16] 0.0, 128
        %946 = vxpose.xlu0.b32.cont [7/16] 0.0, 128
        %947 = vxpose.xlu0.b32.cont [8/16] 0.0, 128
        %948 = vxpose.xlu0.b32.cont [9/16] 0.0, 128
        %949 = vxpose.xlu0.b32.cont [10/16] 0.0, 128
        %950 = vxpose.xlu0.b32.cont [11/16] 0.0, 128
        %951 = vxpose.xlu0.b32.cont [12/16] 0.0, 128
        %952 = vxpose.xlu0.b32.cont [13/16] 0.0, 128
        %953 = vxpose.xlu0.b32.cont [14/16] 0.0, 128
        %954 = vxpose.xlu0.b32.cont [15/16] 0.0, 128
        %955 = vxpose.xlu0.b32.end [16/16] 0.0, 128
        %v956 = vpop.trf.xlu0
        %v957 = vpop.trf.xlu0
        %v958 = vpop.trf.xlu0
        %v959 = vpop.trf.xlu0
        %v960 = vpop.trf.xlu0
        %v961 = vpop.trf.xlu0
        %v962 = vpop.trf.xlu0
        %v963 = vpop.trf.xlu0
        %v964 = vpop.trf.xlu0
        %v965 = vpop.trf.xlu0
        %v966 = vpop.trf.xlu0
        %v967 = vpop.trf.xlu0
        %v968 = vpop.trf.xlu0
        %v969 = vpop.trf.xlu0
        %v970 = vpop.trf.xlu0
        %v971 = vpop.trf.xlu0
        %972 = vxpose.xlu0.b32.start [1/16] %v907, 128
        %973 = vxpose.xlu0.b32.cont [2/16] %v913, 128
        %974 = vxpose.xlu0.b32.cont [3/16] 0.0, 128
        %975 = vxpose.xlu0.b32.cont [4/16] 0.0, 128
        %976 = vxpose.xlu0.b32.cont [5/16] 0.0, 128
        %977 = vxpose.xlu0.b32.cont [6/16] 0.0, 128
        %978 = vxpose.xlu0.b32.cont [7/16] 0.0, 128
        %979 = vxpose.xlu0.b32.cont [8/16] 0.0, 128
        %980 = vxpose.xlu0.b32.cont [9/16] 0.0, 128
        %981 = vxpose.xlu0.b32.cont [10/16] 0.0, 128
        %982 = vxpose.xlu0.b32.cont [11/16] 0.0, 128
        %983 = vxpose.xlu0.b32.cont [12/16] 0.0, 128
        %984 = vxpose.xlu0.b32.cont [13/16] 0.0, 128
        %985 = vxpose.xlu0.b32.cont [14/16] 0.0, 128
        %986 = vxpose.xlu0.b32.cont [15/16] 0.0, 128
        %987 = vxpose.xlu0.b32.end [16/16] 0.0, 128
        %v988 = vpop.trf.xlu0
        %v989 = vpop.trf.xlu0
        %v990 = vpop.trf.xlu0
        %v991 = vpop.trf.xlu0
        %v992 = vpop.trf.xlu0
        %v993 = vpop.trf.xlu0
        %v994 = vpop.trf.xlu0
        %v995 = vpop.trf.xlu0
        %v996 = vpop.trf.xlu0
        %v997 = vpop.trf.xlu0
        %v998 = vpop.trf.xlu0
        %v999 = vpop.trf.xlu0
        %v1000 = vpop.trf.xlu0
        %v1001 = vpop.trf.xlu0
        %v1002 = vpop.trf.xlu0
        %v1003 = vpop.trf.xlu0
        %1004 = vxpose.xlu0.b32.start [1/16] %v919, 128
        %1005 = vxpose.xlu0.b32.cont [2/16] %v925, 128
        %1006 = vxpose.xlu0.b32.cont [3/16] 0.0, 128
        %1007 = vxpose.xlu0.b32.cont [4/16] 0.0, 128
        %1008 = vxpose.xlu0.b32.cont [5/16] 0.0, 128
        %1009 = vxpose.xlu0.b32.cont [6/16] 0.0, 128
        %1010 = vxpose.xlu0.b32.cont [7/16] 0.0, 128
        %1011 = vxpose.xlu0.b32.cont [8/16] 0.0, 128
        %1012 = vxpose.xlu0.b32.cont [9/16] 0.0, 128
        %1013 = vxpose.xlu0.b32.cont [10/16] 0.0, 128
        %1014 = vxpose.xlu0.b32.cont [11/16] 0.0, 128
        %1015 = vxpose.xlu0.b32.cont [12/16] 0.0, 128
        %1016 = vxpose.xlu0.b32.cont [13/16] 0.0, 128
        %1017 = vxpose.xlu0.b32.cont [14/16] 0.0, 128
        %1018 = vxpose.xlu0.b32.cont [15/16] 0.0, 128
        %1019 = vxpose.xlu0.b32.end [16/16] 0.0, 128
        %v1020 = vpop.trf.xlu0
        %v1021 = vpop.trf.xlu0
        %v1022 = vpop.trf.xlu0
        %v1023 = vpop.trf.xlu0
        %v1024 = vpop.trf.xlu0
        %v1025 = vpop.trf.xlu0
        %v1026 = vpop.trf.xlu0
        %v1027 = vpop.trf.xlu0
        %v1028 = vpop.trf.xlu0
        %v1029 = vpop.trf.xlu0
        %v1030 = vpop.trf.xlu0
        %v1031 = vpop.trf.xlu0
        %v1032 = vpop.trf.xlu0
        %v1033 = vpop.trf.xlu0
        %v1034 = vpop.trf.xlu0
        %v1035 = vpop.trf.xlu0
        %1036 = vxpose.xlu0.b32.start [1/16] %v931, 128
        %1037 = vxpose.xlu0.b32.cont [2/16] %v937, 128
        %1038 = vxpose.xlu0.b32.cont [3/16] 0.0, 128
        %1039 = vxpose.xlu0.b32.cont [4/16] 0.0, 128
        %1040 = vxpose.xlu0.b32.cont [5/16] 0.0, 128
        %1041 = vxpose.xlu0.b32.cont [6/16] 0.0, 128
        %1042 = vxpose.xlu0.b32.cont [7/16] 0.0, 128
        %1043 = vxpose.xlu0.b32.cont [8/16] 0.0, 128
        %1044 = vxpose.xlu0.b32.cont [9/16] 0.0, 128
        %1045 = vxpose.xlu0.b32.cont [10/16] 0.0, 128
        %1046 = vxpose.xlu0.b32.cont [11/16] 0.0, 128
        %1047 = vxpose.xlu0.b32.cont [12/16] 0.0, 128
        %1048 = vxpose.xlu0.b32.cont [13/16] 0.0, 128
        %1049 = vxpose.xlu0.b32.cont [14/16] 0.0, 128
        %1050 = vxpose.xlu0.b32.cont [15/16] 0.0, 128
        %1051 = vxpose.xlu0.b32.end [16/16] 0.0, 128
        %v1052 = vpop.trf.xlu0
        %v1053 = vpop.trf.xlu0
        %v1054 = vpop.trf.xlu0
        %v1055 = vpop.trf.xlu0
        %v1056 = vpop.trf.xlu0
        %v1057 = vpop.trf.xlu0
        %v1058 = vpop.trf.xlu0
        %v1059 = vpop.trf.xlu0
        %v1060 = vpop.trf.xlu0
        %v1061 = vpop.trf.xlu0
        %v1062 = vpop.trf.xlu0
        %v1063 = vpop.trf.xlu0
        %v1064 = vpop.trf.xlu0
        %v1065 = vpop.trf.xlu0
        %v1066 = vpop.trf.xlu0
        %v1067 = vpop.trf.xlu0
        %v1069 = vsel %vm155, %v956, 0
        %v1072 = vsel %vm155, %v988, 0
        %v1075 = vsel %vm155, %v1020, 0
        %v1078 = vsel %vm155, %v1052, 0
        %1080 = vmatprep.subr.mxu0 0.0
        %v1081 = vand.u32 %v145, 4294901760
        %1082 = vmatpush1.msra.mxu0 %v1081
        %1083 = vmatprep.subr.mxu0 0.0
        %v1084 = vand.u32 %v146, 4294901760
        %1085 = vmatpush1.msra.mxu0 %v1084
        %1086 = vmatprep.subr.mxu0 0.0
        %1087 = vmatpush1.msra.mxu0 0.0
        %1088 = vmatprep.subr.mxu0 0.0
        %1089 = vmatpush1.msra.mxu0 0.0
        %1090 = vmatprep.subr.mxu0 0.0
        %1091 = vmatpush1.msra.mxu0 0.0
        %1092 = vmatprep.subr.mxu0 0.0
        %1093 = vmatpush1.msra.mxu0 0.0
        %1094 = vmatprep.subr.mxu0 0.0
        %1095 = vmatpush1.msra.mxu0 0.0
        %1096 = vmatprep.subr.mxu0 0.0
        %1097 = vmatpush1.msra.mxu0 0.0
        %1098 = vmatprep.subr.mxu0 0.0
        %1099 = vmatpush1.msra.mxu0 0.0
        %1100 = vmatprep.subr.mxu0 0.0
        %1101 = vmatpush1.msra.mxu0 0.0
        %1102 = vmatprep.subr.mxu0 0.0
        %1103 = vmatpush1.msra.mxu0 0.0
        %1104 = vmatprep.subr.mxu0 0.0
        %1105 = vmatpush1.msra.mxu0 0.0
        %1106 = vmatprep.subr.mxu0 0.0
        %1107 = vmatpush1.msra.mxu0 0.0
        %1108 = vmatprep.subr.mxu0 0.0
        %1109 = vmatpush1.msra.mxu0 0.0
        %1110 = vmatprep.subr.mxu0 0.0
        %1111 = vmatpush1.msra.mxu0 0.0
        %1112 = vmatprep.subr.mxu0 0.0
        %1113 = vmatpush1.msra.mxu0 0.0
        %1114 = vmatprep.subr.mxu0 0.0
        %1115 = vmatpush1.msra.mxu0 0.0
        %1116 = vmatprep.subr.mxu0 0.0
        %1117 = vmatpush1.msra.mxu0 0.0
        %1118 = vmatprep.subr.mxu0 0.0
        %1119 = vmatpush1.msra.mxu0 0.0
        %1120 = vmatprep.subr.mxu0 0.0
        %1121 = vmatpush1.msra.mxu0 0.0
        %1122 = vmatprep.subr.mxu0 0.0
        %1123 = vmatpush1.msra.mxu0 0.0
        %1124 = vmatprep.subr.mxu0 0.0
        %1125 = vmatpush1.msra.mxu0 0.0
        %1126 = vmatprep.subr.mxu0 0.0
        %1127 = vmatpush1.msra.mxu0 0.0
        %1128 = vmatprep.subr.mxu0 0.0
        %1129 = vmatpush1.msra.mxu0 0.0
        %1130 = vmatprep.subr.mxu0 0.0
        %1131 = vmatpush1.msra.mxu0 0.0
        %1132 = vmatprep.subr.mxu0 0.0
        %1133 = vmatpush1.msra.mxu0 0.0
        %1134 = vmatprep.subr.mxu0 0.0
        %1135 = vmatpush1.msra.mxu0 0.0
        %1136 = vmatprep.subr.mxu0 0.0
        %1137 = vmatpush1.msra.mxu0 0.0
        %1138 = vmatprep.subr.mxu0 0.0
        %1139 = vmatpush1.msra.mxu0 0.0
        %1140 = vmatprep.subr.mxu0 0.0
        %1141 = vmatpush1.msra.mxu0 0.0
        %1142 = vmatprep.subr.mxu0 0.0
        %1143 = vmatpush1.msra.mxu0 0.0
        %1144 = vmatprep.subr.mxu0 0.0
        %1145 = vmatpush1.msra.mxu0 0.0
        %1146 = vmatprep.mubr.f32.mxu0 0.0
        %v1147 = vand.u32 %v1069, 4294901760
        %v1148 = vsub.f32 %v1069, %v1147
        %v1149 = vand.u32 %v1148, 4294901760
        %v1150 = vsub.f32 %v1148, %v1149
        %v1151 = vand.u32 %v1150, 4294901760
        %1152 = vmatmul.mubr.f32.gmra.mrb[0].mxu0 %v1151
        %v1153 = vpop.f32.mrb[0].mxu0
        %v1154 = vadd.f32 0.0, %v1153
        %v1155 = vpop.f32.mrb[0].mxu0
        %1156 = vmatprep.mubr.f32.mxu0 0.0
        %v1157 = vand.u32 %v1072, 4294901760
        %v1158 = vsub.f32 %v1072, %v1157
        %v1159 = vand.u32 %v1158, 4294901760
        %v1160 = vsub.f32 %v1158, %v1159
        %v1161 = vand.u32 %v1160, 4294901760
        %1162 = vmatmul.mubr.f32.gmra.mrb[0].mxu0 %v1161
        %v1163 = vpop.f32.mrb[0].mxu0
        %v1164 = vadd.f32 0.0, %v1163
        %v1165 = vpop.f32.mrb[0].mxu0
        %1166 = vmatprep.mubr.f32.mxu0 0.0
        %v1167 = vand.u32 %v1075, 4294901760
        %v1168 = vsub.f32 %v1075, %v1167
        %v1169 = vand.u32 %v1168, 4294901760
        %v1170 = vsub.f32 %v1168, %v1169
        %v1171 = vand.u32 %v1170, 4294901760
        %1172 = vmatmul.mubr.f32.gmra.mrb[0].mxu0 %v1171
        %v1173 = vpop.f32.mrb[0].mxu0
        %v1174 = vadd.f32 0.0, %v1173
        %v1175 = vpop.f32.mrb[0].mxu0
        %1176 = vmatprep.mubr.f32.mxu0 0.0
        %v1177 = vand.u32 %v1078, 4294901760
        %v1178 = vsub.f32 %v1078, %v1177
        %v1179 = vand.u32 %v1178, 4294901760
        %v1180 = vsub.f32 %v1178, %v1179
        %v1181 = vand.u32 %v1180, 4294901760
        %1182 = vmatmul.mubr.f32.gmra.mrb[0].mxu0 %v1181
        %v1183 = vpop.f32.mrb[0].mxu0
        %v1184 = vadd.f32 0.0, %v1183
        %v1185 = vpop.f32.mrb[0].mxu0
        %1186 = vdwg.mxu0
        %1187 = vmatprep.subr.mxu0 0.0
        %v1188 = vand.u32 %v145, 4294901760
        %v1189 = vsub.f32 %v145, %v1188
        %v1190 = vand.u32 %v1189, 4294901760
        %v1191 = vsub.f32 %v1189, %v1190
        %v1192 = vand.u32 %v1191, 4294901760
        %1193 = vmatpush1.msra.mxu0 %v1192
        %1194 = vmatprep.subr.mxu0 0.0
        %v1195 = vand.u32 %v146, 4294901760
        %v1196 = vsub.f32 %v146, %v1195
        %v1197 = vand.u32 %v1196, 4294901760
        %v1198 = vsub.f32 %v1196, %v1197
        %v1199 = vand.u32 %v1198, 4294901760
        %1200 = vmatpush1.msra.mxu0 %v1199
        %1201 = vmatprep.subr.mxu0 0.0
        %1202 = vmatpush1.msra.mxu0 0.0
        %1203 = vmatprep.subr.mxu0 0.0
        %1204 = vmatpush1.msra.mxu0 0.0
        %1205 = vmatprep.subr.mxu0 0.0
        %1206 = vmatpush1.msra.mxu0 0.0
        %1207 = vmatprep.subr.mxu0 0.0
        %1208 = vmatpush1.msra.mxu0 0.0
        %1209 = vmatprep.subr.mxu0 0.0
        %1210 = vmatpush1.msra.mxu0 0.0
        %1211 = vmatprep.subr.mxu0 0.0
        %1212 = vmatpush1.msra.mxu0 0.0
        %1213 = vmatprep.subr.mxu0 0.0
        %1214 = vmatpush1.msra.mxu0 0.0
        %1215 = vmatprep.subr.mxu0 0.0
        %1216 = vmatpush1.msra.mxu0 0.0
        %1217 = vmatprep.subr.mxu0 0.0
        %1218 = vmatpush1.msra.mxu0 0.0
        %1219 = vmatprep.subr.mxu0 0.0
        %1220 = vmatpush1.msra.mxu0 0.0
        %1221 = vmatprep.subr.mxu0 0.0
        %1222 = vmatpush1.msra.mxu0 0.0
        %1223 = vmatprep.subr.mxu0 0.0
        %1224 = vmatpush1.msra.mxu0 0.0
        %1225 = vmatprep.subr.mxu0 0.0
        %1226 = vmatpush1.msra.mxu0 0.0
        %1227 = vmatprep.subr.mxu0 0.0
        %1228 = vmatpush1.msra.mxu0 0.0
        %1229 = vmatprep.subr.mxu0 0.0
        %1230 = vmatpush1.msra.mxu0 0.0
        %1231 = vmatprep.subr.mxu0 0.0
        %1232 = vmatpush1.msra.mxu0 0.0
        %1233 = vmatprep.subr.mxu0 0.0
        %1234 = vmatpush1.msra.mxu0 0.0
        %1235 = vmatprep.subr.mxu0 0.0
        %1236 = vmatpush1.msra.mxu0 0.0
        %1237 = vmatprep.subr.mxu0 0.0
        %1238 = vmatpush1.msra.mxu0 0.0
        %1239 = vmatprep.subr.mxu0 0.0
        %1240 = vmatpush1.msra.mxu0 0.0
        %1241 = vmatprep.subr.mxu0 0.0
        %1242 = vmatpush1.msra.mxu0 0.0
        %1243 = vmatprep.subr.mxu0 0.0
        %1244 = vmatpush1.msra.mxu0 0.0
        %1245 = vmatprep.subr.mxu0 0.0
        %1246 = vmatpush1.msra.mxu0 0.0
        %1247 = vmatprep.subr.mxu0 0.0
        %1248 = vmatpush1.msra.mxu0 0.0
        %1249 = vmatprep.subr.mxu0 0.0
        %1250 = vmatpush1.msra.mxu0 0.0
        %1251 = vmatprep.subr.mxu0 0.0
        %1252 = vmatpush1.msra.mxu0 0.0
        %1253 = vmatprep.subr.mxu0 0.0
        %1254 = vmatpush1.msra.mxu0 0.0
        %1255 = vmatprep.subr.mxu0 0.0
        %1256 = vmatpush1.msra.mxu0 0.0
        %1257 = vmatprep.subr.mxu0 0.0
        %1258 = vmatpush1.msra.mxu0 0.0
        %1259 = vmatprep.subr.mxu0 0.0
        %1260 = vmatpush1.msra.mxu0 0.0
        %1261 = vmatprep.mubr.f32.mxu0 0.0
        %v1262 = vand.u32 %v1069, 4294901760
        %1263 = vmatmul.mubr.f32.gmra.mrb[0].mxu0 %v1262
        %v1264 = vpop.f32.mrb[0].mxu0
        %v1265 = vadd.f32 %v1154, %v1264
        %v1266 = vpop.f32.mrb[0].mxu0
        %1267 = vmatprep.mubr.f32.mxu0 0.0
        %v1268 = vand.u32 %v1072, 4294901760
        %1269 = vmatmul.mubr.f32.gmra.mrb[0].mxu0 %v1268
        %v1270 = vpop.f32.mrb[0].mxu0
        %v1271 = vadd.f32 %v1164, %v1270
        %v1272 = vpop.f32.mrb[0].mxu0
        %1273 = vmatprep.mubr.f32.mxu0 0.0
        %v1274 = vand.u32 %v1075, 4294901760
        %1275 = vmatmul.mubr.f32.gmra.mrb[0].mxu0 %v1274
        %v1276 = vpop.f32.mrb[0].mxu0
        %v1277 = vadd.f32 %v1174, %v1276
        %v1278 = vpop.f32.mrb[0].mxu0
        %1279 = vmatprep.mubr.f32.mxu0 0.0
        %v1280 = vand.u32 %v1078, 4294901760
        %1281 = vmatmul.mubr.f32.gmra.mrb[0].mxu0 %v1280
        %v1282 = vpop.f32.mrb[0].mxu0
        %v1283 = vadd.f32 %v1184, %v1282
        %v1284 = vpop.f32.mrb[0].mxu0
        %1285 = vdwg.mxu0
        %1286 = vmatprep.subr.mxu0 0.0
        %v1287 = vand.u32 %v145, 4294901760
        %v1288 = vsub.f32 %v145, %v1287
        %1289 = vmatpush1.msra.mxu0 %v1288
        %1290 = vmatprep.subr.mxu0 0.0
        %v1291 = vand.u32 %v146, 4294901760
        %v1292 = vsub.f32 %v146, %v1291
        %1293 = vmatpush1.msra.mxu0 %v1292
        %1294 = vmatprep.subr.mxu0 0.0
        %1295 = vmatpush1.msra.mxu0 0.0
        %1296 = vmatprep.subr.mxu0 0.0
        %1297 = vmatpush1.msra.mxu0 0.0
        %1298 = vmatprep.subr.mxu0 0.0
        %1299 = vmatpush1.msra.mxu0 0.0
        %1300 = vmatprep.subr.mxu0 0.0
        %1301 = vmatpush1.msra.mxu0 0.0
        %1302 = vmatprep.subr.mxu0 0.0
        %1303 = vmatpush1.msra.mxu0 0.0
        %1304 = vmatprep.subr.mxu0 0.0
        %1305 = vmatpush1.msra.mxu0 0.0
        %1306 = vmatprep.subr.mxu0 0.0
        %1307 = vmatpush1.msra.mxu0 0.0
        %1308 = vmatprep.subr.mxu0 0.0
        %1309 = vmatpush1.msra.mxu0 0.0
        %1310 = vmatprep.subr.mxu0 0.0
        %1311 = vmatpush1.msra.mxu0 0.0
        %1312 = vmatprep.subr.mxu0 0.0
        %1313 = vmatpush1.msra.mxu0 0.0
        %1314 = vmatprep.subr.mxu0 0.0
        %1315 = vmatpush1.msra.mxu0 0.0
        %1316 = vmatprep.subr.mxu0 0.0
        %1317 = vmatpush1.msra.mxu0 0.0
        %1318 = vmatprep.subr.mxu0 0.0
        %1319 = vmatpush1.msra.mxu0 0.0
        %1320 = vmatprep.subr.mxu0 0.0
        %1321 = vmatpush1.msra.mxu0 0.0
        %1322 = vmatprep.subr.mxu0 0.0
        %1323 = vmatpush1.msra.mxu0 0.0
        %1324 = vmatprep.subr.mxu0 0.0
        %1325 = vmatpush1.msra.mxu0 0.0
        %1326 = vmatprep.subr.mxu0 0.0
        %1327 = vmatpush1.msra.mxu0 0.0
        %1328 = vmatprep.subr.mxu0 0.0
        %1329 = vmatpush1.msra.mxu0 0.0
        %1330 = vmatprep.subr.mxu0 0.0
        %1331 = vmatpush1.msra.mxu0 0.0
        %1332 = vmatprep.subr.mxu0 0.0
        %1333 = vmatpush1.msra.mxu0 0.0
        %1334 = vmatprep.subr.mxu0 0.0
        %1335 = vmatpush1.msra.mxu0 0.0
        %1336 = vmatprep.subr.mxu0 0.0
        %1337 = vmatpush1.msra.mxu0 0.0
        %1338 = vmatprep.subr.mxu0 0.0
        %1339 = vmatpush1.msra.mxu0 0.0
        %1340 = vmatprep.subr.mxu0 0.0
        %1341 = vmatpush1.msra.mxu0 0.0
        %1342 = vmatprep.subr.mxu0 0.0
        %1343 = vmatpush1.msra.mxu0 0.0
        %1344 = vmatprep.subr.mxu0 0.0
        %1345 = vmatpush1.msra.mxu0 0.0
        %1346 = vmatprep.subr.mxu0 0.0
        %1347 = vmatpush1.msra.mxu0 0.0
        %1348 = vmatprep.subr.mxu0 0.0
        %1349 = vmatpush1.msra.mxu0 0.0
        %1350 = vmatprep.subr.mxu0 0.0
        %1351 = vmatpush1.msra.mxu0 0.0
        %1352 = vmatprep.subr.mxu0 0.0
        %1353 = vmatpush1.msra.mxu0 0.0
        %1354 = vmatprep.mubr.f32.mxu0 0.0
        %v1355 = vand.u32 %v1069, 4294901760
        %v1356 = vsub.f32 %v1069, %v1355
        %1357 = vmatmul.mubr.f32.gmra.mrb[0].mxu0 %v1356
        %v1358 = vpop.f32.mrb[0].mxu0
        %v1359 = vadd.f32 %v1265, %v1358
        %v1360 = vpop.f32.mrb[0].mxu0
        %1361 = vmatprep.mubr.f32.mxu0 0.0
        %v1362 = vand.u32 %v1072, 4294901760
        %v1363 = vsub.f32 %v1072, %v1362
        %1364 = vmatmul.mubr.f32.gmra.mrb[0].mxu0 %v1363
        %v1365 = vpop.f32.mrb[0].mxu0
        %v1366 = vadd.f32 %v1271, %v1365
        %v1367 = vpop.f32.mrb[0].mxu0
        %1368 = vmatprep.mubr.f32.mxu0 0.0
        %v1369 = vand.u32 %v1075, 4294901760
        %v1370 = vsub.f32 %v1075, %v1369
        %1371 = vmatmul.mubr.f32.gmra.mrb[0].mxu0 %v1370
        %v1372 = vpop.f32.mrb[0].mxu0
        %v1373 = vadd.f32 %v1277, %v1372
        %v1374 = vpop.f32.mrb[0].mxu0
        %1375 = vmatprep.mubr.f32.mxu0 0.0
        %v1376 = vand.u32 %v1078, 4294901760
        %v1377 = vsub.f32 %v1078, %v1376
        %1378 = vmatmul.mubr.f32.gmra.mrb[0].mxu0 %v1377
        %v1379 = vpop.f32.mrb[0].mxu0
        %v1380 = vadd.f32 %v1283, %v1379
        %v1381 = vpop.f32.mrb[0].mxu0
        %1382 = vdwg.mxu0
        %1383 = vmatprep.subr.mxu0 0.0
        %v1384 = vand.u32 %v145, 4294901760
        %1385 = vmatpush1.msra.mxu0 %v1384
        %1386 = vmatprep.subr.mxu0 0.0
        %v1387 = vand.u32 %v146, 4294901760
        %1388 = vmatpush1.msra.mxu0 %v1387
        %1389 = vmatprep.subr.mxu0 0.0
        %1390 = vmatpush1.msra.mxu0 0.0
        %1391 = vmatprep.subr.mxu0 0.0
        %1392 = vmatpush1.msra.mxu0 0.0
        %1393 = vmatprep.subr.mxu0 0.0
        %1394 = vmatpush1.msra.mxu0 0.0
        %1395 = vmatprep.subr.mxu0 0.0
        %1396 = vmatpush1.msra.mxu0 0.0
        %1397 = vmatprep.subr.mxu0 0.0
        %1398 = vmatpush1.msra.mxu0 0.0
        %1399 = vmatprep.subr.mxu0 0.0
        %1400 = vmatpush1.msra.mxu0 0.0
        %1401 = vmatprep.subr.mxu0 0.0
        %1402 = vmatpush1.msra.mxu0 0.0
        %1403 = vmatprep.subr.mxu0 0.0
        %1404 = vmatpush1.msra.mxu0 0.0
        %1405 = vmatprep.subr.mxu0 0.0
        %1406 = vmatpush1.msra.mxu0 0.0
        %1407 = vmatprep.subr.mxu0 0.0
        %1408 = vmatpush1.msra.mxu0 0.0
        %1409 = vmatprep.subr.mxu0 0.0
        %1410 = vmatpush1.msra.mxu0 0.0
        %1411 = vmatprep.subr.mxu0 0.0
        %1412 = vmatpush1.msra.mxu0 0.0
        %1413 = vmatprep.subr.mxu0 0.0
        %1414 = vmatpush1.msra.mxu0 0.0
        %1415 = vmatprep.subr.mxu0 0.0
        %1416 = vmatpush1.msra.mxu0 0.0
        %1417 = vmatprep.subr.mxu0 0.0
        %1418 = vmatpush1.msra.mxu0 0.0
        %1419 = vmatprep.subr.mxu0 0.0
        %1420 = vmatpush1.msra.mxu0 0.0
        %1421 = vmatprep.subr.mxu0 0.0
        %1422 = vmatpush1.msra.mxu0 0.0
        %1423 = vmatprep.subr.mxu0 0.0
        %1424 = vmatpush1.msra.mxu0 0.0
        %1425 = vmatprep.subr.mxu0 0.0
        %1426 = vmatpush1.msra.mxu0 0.0
        %1427 = vmatprep.subr.mxu0 0.0
        %1428 = vmatpush1.msra.mxu0 0.0
        %1429 = vmatprep.subr.mxu0 0.0
        %1430 = vmatpush1.msra.mxu0 0.0
        %1431 = vmatprep.subr.mxu0 0.0
        %1432 = vmatpush1.msra.mxu0 0.0
        %1433 = vmatprep.subr.mxu0 0.0
        %1434 = vmatpush1.msra.mxu0 0.0
        %1435 = vmatprep.subr.mxu0 0.0
        %1436 = vmatpush1.msra.mxu0 0.0
        %1437 = vmatprep.subr.mxu0 0.0
        %1438 = vmatpush1.msra.mxu0 0.0
        %1439 = vmatprep.subr.mxu0 0.0
        %1440 = vmatpush1.msra.mxu0 0.0
        %1441 = vmatprep.subr.mxu0 0.0
        %1442 = vmatpush1.msra.mxu0 0.0
        %1443 = vmatprep.subr.mxu0 0.0
        %1444 = vmatpush1.msra.mxu0 0.0
        %1445 = vmatprep.subr.mxu0 0.0
        %1446 = vmatpush1.msra.mxu0 0.0
        %1447 = vmatprep.subr.mxu0 0.0
        %1448 = vmatpush1.msra.mxu0 0.0
        %1449 = vmatprep.mubr.f32.mxu0 0.0
        %v1450 = vand.u32 %v1069, 4294901760
        %v1451 = vsub.f32 %v1069, %v1450
        %v1452 = vand.u32 %v1451, 4294901760
        %1453 = vmatmul.mubr.f32.gmra.mrb[0].mxu0 %v1452
        %v1454 = vpop.f32.mrb[0].mxu0
        %v1455 = vadd.f32 %v1359, %v1454
        %v1456 = vpop.f32.mrb[0].mxu0
        %1457 = vmatprep.mubr.f32.mxu0 0.0
        %v1458 = vand.u32 %v1072, 4294901760
        %v1459 = vsub.f32 %v1072, %v1458
        %v1460 = vand.u32 %v1459, 4294901760
        %1461 = vmatmul.mubr.f32.gmra.mrb[0].mxu0 %v1460
        %v1462 = vpop.f32.mrb[0].mxu0
        %v1463 = vadd.f32 %v1366, %v1462
        %v1464 = vpop.f32.mrb[0].mxu0
        %1465 = vmatprep.mubr.f32.mxu0 0.0
        %v1466 = vand.u32 %v1075, 4294901760
        %v1467 = vsub.f32 %v1075, %v1466
        %v1468 = vand.u32 %v1467, 4294901760
        %1469 = vmatmul.mubr.f32.gmra.mrb[0].mxu0 %v1468
        %v1470 = vpop.f32.mrb[0].mxu0
        %v1471 = vadd.f32 %v1373, %v1470
        %v1472 = vpop.f32.mrb[0].mxu0
        %1473 = vmatprep.mubr.f32.mxu0 0.0
        %v1474 = vand.u32 %v1078, 4294901760
        %v1475 = vsub.f32 %v1078, %v1474
        %v1476 = vand.u32 %v1475, 4294901760
        %1477 = vmatmul.mubr.f32.gmra.mrb[0].mxu0 %v1476
        %v1478 = vpop.f32.mrb[0].mxu0
        %v1479 = vadd.f32 %v1380, %v1478
        %v1480 = vpop.f32.mrb[0].mxu0
        %1481 = vdwg.mxu0
        %1482 = vmatprep.subr.mxu0 0.0
        %v1483 = vand.u32 %v145, 4294901760
        %v1484 = vsub.f32 %v145, %v1483
        %v1485 = vand.u32 %v1484, 4294901760
        %1486 = vmatpush1.msra.mxu0 %v1485
        %1487 = vmatprep.subr.mxu0 0.0
        %v1488 = vand.u32 %v146, 4294901760
        %v1489 = vsub.f32 %v146, %v1488
        %v1490 = vand.u32 %v1489, 4294901760
        %1491 = vmatpush1.msra.mxu0 %v1490
        %1492 = vmatprep.subr.mxu0 0.0
        %1493 = vmatpush1.msra.mxu0 0.0
        %1494 = vmatprep.subr.mxu0 0.0
        %1495 = vmatpush1.msra.mxu0 0.0
        %1496 = vmatprep.subr.mxu0 0.0
        %1497 = vmatpush1.msra.mxu0 0.0
        %1498 = vmatprep.subr.mxu0 0.0
        %1499 = vmatpush1.msra.mxu0 0.0
        %1500 = vmatprep.subr.mxu0 0.0
        %1501 = vmatpush1.msra.mxu0 0.0
        %1502 = vmatprep.subr.mxu0 0.0
        %1503 = vmatpush1.msra.mxu0 0.0
        %1504 = vmatprep.subr.mxu0 0.0
        %1505 = vmatpush1.msra.mxu0 0.0
        %1506 = vmatprep.subr.mxu0 0.0
        %1507 = vmatpush1.msra.mxu0 0.0
        %1508 = vmatprep.subr.mxu0 0.0
        %1509 = vmatpush1.msra.mxu0 0.0
        %1510 = vmatprep.subr.mxu0 0.0
        %1511 = vmatpush1.msra.mxu0 0.0
        %1512 = vmatprep.subr.mxu0 0.0
        %1513 = vmatpush1.msra.mxu0 0.0
        %1514 = vmatprep.subr.mxu0 0.0
        %1515 = vmatpush1.msra.mxu0 0.0
        %1516 = vmatprep.subr.mxu0 0.0
        %1517 = vmatpush1.msra.mxu0 0.0
        %1518 = vmatprep.subr.mxu0 0.0
        %1519 = vmatpush1.msra.mxu0 0.0
        %1520 = vmatprep.subr.mxu0 0.0
        %1521 = vmatpush1.msra.mxu0 0.0
        %1522 = vmatprep.subr.mxu0 0.0
        %1523 = vmatpush1.msra.mxu0 0.0
        %1524 = vmatprep.subr.mxu0 0.0
        %1525 = vmatpush1.msra.mxu0 0.0
        %1526 = vmatprep.subr.mxu0 0.0
        %1527 = vmatpush1.msra.mxu0 0.0
        %1528 = vmatprep.subr.mxu0 0.0
        %1529 = vmatpush1.msra.mxu0 0.0
        %1530 = vmatprep.subr.mxu0 0.0
        %1531 = vmatpush1.msra.mxu0 0.0
        %1532 = vmatprep.subr.mxu0 0.0
        %1533 = vmatpush1.msra.mxu0 0.0
        %1534 = vmatprep.subr.mxu0 0.0
        %1535 = vmatpush1.msra.mxu0 0.0
        %1536 = vmatprep.subr.mxu0 0.0
        %1537 = vmatpush1.msra.mxu0 0.0
        %1538 = vmatprep.subr.mxu0 0.0
        %1539 = vmatpush1.msra.mxu0 0.0
        %1540 = vmatprep.subr.mxu0 0.0
        %1541 = vmatpush1.msra.mxu0 0.0
        %1542 = vmatprep.subr.mxu0 0.0
        %1543 = vmatpush1.msra.mxu0 0.0
        %1544 = vmatprep.subr.mxu0 0.0
        %1545 = vmatpush1.msra.mxu0 0.0
        %1546 = vmatprep.subr.mxu0 0.0
        %1547 = vmatpush1.msra.mxu0 0.0
        %1548 = vmatprep.subr.mxu0 0.0
        %1549 = vmatpush1.msra.mxu0 0.0
        %1550 = vmatprep.subr.mxu0 0.0
        %1551 = vmatpush1.msra.mxu0 0.0
        %1552 = vmatprep.mubr.f32.mxu0 0.0
        %v1553 = vand.u32 %v1069, 4294901760
        %1554 = vmatmul.mubr.f32.gmra.mrb[0].mxu0 %v1553
        %v1555 = vpop.f32.mrb[0].mxu0
        %v1556 = vadd.f32 %v1455, %v1555
        %v1557 = vpop.f32.mrb[0].mxu0
        %1558 = vmatprep.mubr.f32.mxu0 0.0
        %v1559 = vand.u32 %v1072, 4294901760
        %1560 = vmatmul.mubr.f32.gmra.mrb[0].mxu0 %v1559
        %v1561 = vpop.f32.mrb[0].mxu0
        %v1562 = vadd.f32 %v1463, %v1561
        %v1563 = vpop.f32.mrb[0].mxu0
        %1564 = vmatprep.mubr.f32.mxu0 0.0
        %v1565 = vand.u32 %v1075, 4294901760
        %1566 = vmatmul.mubr.f32.gmra.mrb[0].mxu0 %v1565
        %v1567 = vpop.f32.mrb[0].mxu0
        %v1568 = vadd.f32 %v1471, %v1567
        %v1569 = vpop.f32.mrb[0].mxu0
        %1570 = vmatprep.mubr.f32.mxu0 0.0
        %v1571 = vand.u32 %v1078, 4294901760
        %1572 = vmatmul.mubr.f32.gmra.mrb[0].mxu0 %v1571
        %v1573 = vpop.f32.mrb[0].mxu0
        %v1574 = vadd.f32 %v1479, %v1573
        %v1575 = vpop.f32.mrb[0].mxu0
        %1576 = vdwg.mxu0
        %1577 = vmatprep.subr.mxu0 0.0
        %v1578 = vand.u32 %v145, 4294901760
        %1579 = vmatpush1.msra.mxu0 %v1578
        %1580 = vmatprep.subr.mxu0 0.0
        %v1581 = vand.u32 %v146, 4294901760
        %1582 = vmatpush1.msra.mxu0 %v1581
        %1583 = vmatprep.subr.mxu0 0.0
        %1584 = vmatpush1.msra.mxu0 0.0
        %1585 = vmatprep.subr.mxu0 0.0
        %1586 = vmatpush1.msra.mxu0 0.0
        %1587 = vmatprep.subr.mxu0 0.0
        %1588 = vmatpush1.msra.mxu0 0.0
        %1589 = vmatprep.subr.mxu0 0.0
        %1590 = vmatpush1.msra.mxu0 0.0
        %1591 = vmatprep.subr.mxu0 0.0
        %1592 = vmatpush1.msra.mxu0 0.0
        %1593 = vmatprep.subr.mxu0 0.0
        %1594 = vmatpush1.msra.mxu0 0.0
        %1595 = vmatprep.subr.mxu0 0.0
        %1596 = vmatpush1.msra.mxu0 0.0
        %1597 = vmatprep.subr.mxu0 0.0
        %1598 = vmatpush1.msra.mxu0 0.0
        %1599 = vmatprep.subr.mxu0 0.0
        %1600 = vmatpush1.msra.mxu0 0.0
        %1601 = vmatprep.subr.mxu0 0.0
        %1602 = vmatpush1.msra.mxu0 0.0
        %1603 = vmatprep.subr.mxu0 0.0
        %1604 = vmatpush1.msra.mxu0 0.0
        %1605 = vmatprep.subr.mxu0 0.0
        %1606 = vmatpush1.msra.mxu0 0.0
        %1607 = vmatprep.subr.mxu0 0.0
        %1608 = vmatpush1.msra.mxu0 0.0
        %1609 = vmatprep.subr.mxu0 0.0
        %1610 = vmatpush1.msra.mxu0 0.0
        %1611 = vmatprep.subr.mxu0 0.0
        %1612 = vmatpush1.msra.mxu0 0.0
        %1613 = vmatprep.subr.mxu0 0.0
        %1614 = vmatpush1.msra.mxu0 0.0
        %1615 = vmatprep.subr.mxu0 0.0
        %1616 = vmatpush1.msra.mxu0 0.0
        %1617 = vmatprep.subr.mxu0 0.0
        %1618 = vmatpush1.msra.mxu0 0.0
        %1619 = vmatprep.subr.mxu0 0.0
        %1620 = vmatpush1.msra.mxu0 0.0
        %1621 = vmatprep.subr.mxu0 0.0
        %1622 = vmatpush1.msra.mxu0 0.0
        %1623 = vmatprep.subr.mxu0 0.0
        %1624 = vmatpush1.msra.mxu0 0.0
        %1625 = vmatprep.subr.mxu0 0.0
        %1626 = vmatpush1.msra.mxu0 0.0
        %1627 = vmatprep.subr.mxu0 0.0
        %1628 = vmatpush1.msra.mxu0 0.0
        %1629 = vmatprep.subr.mxu0 0.0
        %1630 = vmatpush1.msra.mxu0 0.0
        %1631 = vmatprep.subr.mxu0 0.0
        %1632 = vmatpush1.msra.mxu0 0.0
        %1633 = vmatprep.subr.mxu0 0.0
        %1634 = vmatpush1.msra.mxu0 0.0
        %1635 = vmatprep.subr.mxu0 0.0
        %1636 = vmatpush1.msra.mxu0 0.0
        %1637 = vmatprep.subr.mxu0 0.0
        %1638 = vmatpush1.msra.mxu0 0.0
        %1639 = vmatprep.subr.mxu0 0.0
        %1640 = vmatpush1.msra.mxu0 0.0
        %1641 = vmatprep.subr.mxu0 0.0
        %1642 = vmatpush1.msra.mxu0 0.0
        %1643 = vmatprep.mubr.f32.mxu0 0.0
        %v1644 = vand.u32 %v1069, 4294901760
        %1645 = vmatmul.mubr.f32.gmra.mrb[0].mxu0 %v1644
        %v1646 = vpop.f32.mrb[0].mxu0
        %v1647 = vadd.f32 %v1556, %v1646
        %v1648 = vpop.f32.mrb[0].mxu0
        %1649 = vmatprep.mubr.f32.mxu0 0.0
        %v1650 = vand.u32 %v1072, 4294901760
        %1651 = vmatmul.mubr.f32.gmra.mrb[0].mxu0 %v1650
        %v1652 = vpop.f32.mrb[0].mxu0
        %v1653 = vadd.f32 %v1562, %v1652
        %v1654 = vpop.f32.mrb[0].mxu0
        %1655 = vmatprep.mubr.f32.mxu0 0.0
        %v1656 = vand.u32 %v1075, 4294901760
        %1657 = vmatmul.mubr.f32.gmra.mrb[0].mxu0 %v1656
        %v1658 = vpop.f32.mrb[0].mxu0
        %v1659 = vadd.f32 %v1568, %v1658
        %v1660 = vpop.f32.mrb[0].mxu0
        %1661 = vmatprep.mubr.f32.mxu0 0.0
        %v1662 = vand.u32 %v1078, 4294901760
        %1663 = vmatmul.mubr.f32.gmra.mrb[0].mxu0 %v1662
        %v1664 = vpop.f32.mrb[0].mxu0
        %v1665 = vadd.f32 %v1574, %v1664
        %v1666 = vpop.f32.mrb[0].mxu0
        %1667 = vdwg.mxu0
        %1668 = vxpose.xlu0.b32.start [1/16] %v1647, 128
        %1669 = vxpose.xlu0.b32.cont [2/16] 0.0, 128
        %1670 = vxpose.xlu0.b32.cont [3/16] 0.0, 128
        %1671 = vxpose.xlu0.b32.cont [4/16] 0.0, 128
        %1672 = vxpose.xlu0.b32.cont [5/16] 0.0, 128
        %1673 = vxpose.xlu0.b32.cont [6/16] 0.0, 128
        %1674 = vxpose.xlu0.b32.cont [7/16] 0.0, 128
        %1675 = vxpose.xlu0.b32.cont [8/16] 0.0, 128
        %1676 = vxpose.xlu0.b32.cont [9/16] 0.0, 128
        %1677 = vxpose.xlu0.b32.cont [10/16] 0.0, 128
        %1678 = vxpose.xlu0.b32.cont [11/16] 0.0, 128
        %1679 = vxpose.xlu0.b32.cont [12/16] 0.0, 128
        %1680 = vxpose.xlu0.b32.cont [13/16] 0.0, 128
        %1681 = vxpose.xlu0.b32.cont [14/16] 0.0, 128
        %1682 = vxpose.xlu0.b32.cont [15/16] 0.0, 128
        %1683 = vxpose.xlu0.b32.end [16/16] 0.0, 128
        %v1684 = vpop.trf.xlu0
        %v1685 = vpop.trf.xlu0
        %v1686 = vpop.trf.xlu0
        %v1687 = vpop.trf.xlu0
        %v1688 = vpop.trf.xlu0
        %v1689 = vpop.trf.xlu0
        %v1690 = vpop.trf.xlu0
        %v1691 = vpop.trf.xlu0
        %v1692 = vpop.trf.xlu0
        %v1693 = vpop.trf.xlu0
        %v1694 = vpop.trf.xlu0
        %v1695 = vpop.trf.xlu0
        %v1696 = vpop.trf.xlu0
        %v1697 = vpop.trf.xlu0
        %v1698 = vpop.trf.xlu0
        %v1699 = vpop.trf.xlu0
        %1700 = vxpose.xlu0.b32.start [1/16] %v1653, 128
        %1701 = vxpose.xlu0.b32.cont [2/16] 0.0, 128
        %1702 = vxpose.xlu0.b32.cont [3/16] 0.0, 128
        %1703 = vxpose.xlu0.b32.cont [4/16] 0.0, 128
        %1704 = vxpose.xlu0.b32.cont [5/16] 0.0, 128
        %1705 = vxpose.xlu0.b32.cont [6/16] 0.0, 128
        %1706 = vxpose.xlu0.b32.cont [7/16] 0.0, 128
        %1707 = vxpose.xlu0.b32.cont [8/16] 0.0, 128
        %1708 = vxpose.xlu0.b32.cont [9/16] 0.0, 128
        %1709 = vxpose.xlu0.b32.cont [10/16] 0.0, 128
        %1710 = vxpose.xlu0.b32.cont [11/16] 0.0, 128
        %1711 = vxpose.xlu0.b32.cont [12/16] 0.0, 128
        %1712 = vxpose.xlu0.b32.cont [13/16] 0.0, 128
        %1713 = vxpose.xlu0.b32.cont [14/16] 0.0, 128
        %1714 = vxpose.xlu0.b32.cont [15/16] 0.0, 128
        %1715 = vxpose.xlu0.b32.end [16/16] 0.0, 128
        %v1716 = vpop.trf.xlu0
        %v1717 = vpop.trf.xlu0
        %v1718 = vpop.trf.xlu0
        %v1719 = vpop.trf.xlu0
        %v1720 = vpop.trf.xlu0
        %v1721 = vpop.trf.xlu0
        %v1722 = vpop.trf.xlu0
        %v1723 = vpop.trf.xlu0
        %v1724 = vpop.trf.xlu0
        %v1725 = vpop.trf.xlu0
        %v1726 = vpop.trf.xlu0
        %v1727 = vpop.trf.xlu0
        %v1728 = vpop.trf.xlu0
        %v1729 = vpop.trf.xlu0
        %v1730 = vpop.trf.xlu0
        %v1731 = vpop.trf.xlu0
        %1732 = vxpose.xlu0.b32.start [1/16] %v1659, 128
        %1733 = vxpose.xlu0.b32.cont [2/16] 0.0, 128
        %1734 = vxpose.xlu0.b32.cont [3/16] 0.0, 128
        %1735 = vxpose.xlu0.b32.cont [4/16] 0.0, 128
        %1736 = vxpose.xlu0.b32.cont [5/16] 0.0, 128
        %1737 = vxpose.xlu0.b32.cont [6/16] 0.0, 128
        %1738 = vxpose.xlu0.b32.cont [7/16] 0.0, 128
        %1739 = vxpose.xlu0.b32.cont [8/16] 0.0, 128
        %1740 = vxpose.xlu0.b32.cont [9/16] 0.0, 128
        %1741 = vxpose.xlu0.b32.cont [10/16] 0.0, 128
        %1742 = vxpose.xlu0.b32.cont [11/16] 0.0, 128
        %1743 = vxpose.xlu0.b32.cont [12/16] 0.0, 128
        %1744 = vxpose.xlu0.b32.cont [13/16] 0.0, 128
        %1745 = vxpose.xlu0.b32.cont [14/16] 0.0, 128
        %1746 = vxpose.xlu0.b32.cont [15/16] 0.0, 128
        %1747 = vxpose.xlu0.b32.end [16/16] 0.0, 128
        %v1748 = vpop.trf.xlu0
        %v1749 = vpop.trf.xlu0
        %v1750 = vpop.trf.xlu0
        %v1751 = vpop.trf.xlu0
        %v1752 = vpop.trf.xlu0
        %v1753 = vpop.trf.xlu0
        %v1754 = vpop.trf.xlu0
        %v1755 = vpop.trf.xlu0
        %v1756 = vpop.trf.xlu0
        %v1757 = vpop.trf.xlu0
        %v1758 = vpop.trf.xlu0
        %v1759 = vpop.trf.xlu0
        %v1760 = vpop.trf.xlu0
        %v1761 = vpop.trf.xlu0
        %v1762 = vpop.trf.xlu0
        %v1763 = vpop.trf.xlu0
        %1764 = vxpose.xlu0.b32.start [1/16] %v1665, 128
        %1765 = vxpose.xlu0.b32.cont [2/16] 0.0, 128
        %1766 = vxpose.xlu0.b32.cont [3/16] 0.0, 128
        %1767 = vxpose.xlu0.b32.cont [4/16] 0.0, 128
        %1768 = vxpose.xlu0.b32.cont [5/16] 0.0, 128
        %1769 = vxpose.xlu0.b32.cont [6/16] 0.0, 128
        %1770 = vxpose.xlu0.b32.cont [7/16] 0.0, 128
        %1771 = vxpose.xlu0.b32.cont [8/16] 0.0, 128
        %1772 = vxpose.xlu0.b32.cont [9/16] 0.0, 128
        %1773 = vxpose.xlu0.b32.cont [10/16] 0.0, 128
        %1774 = vxpose.xlu0.b32.cont [11/16] 0.0, 128
        %1775 = vxpose.xlu0.b32.cont [12/16] 0.0, 128
        %1776 = vxpose.xlu0.b32.cont [13/16] 0.0, 128
        %1777 = vxpose.xlu0.b32.cont [14/16] 0.0, 128
        %1778 = vxpose.xlu0.b32.cont [15/16] 0.0, 128
        %1779 = vxpose.xlu0.b32.end [16/16] 0.0, 128
        %v1780 = vpop.trf.xlu0
        %v1781 = vpop.trf.xlu0
        %v1782 = vpop.trf.xlu0
        %v1783 = vpop.trf.xlu0
        %v1784 = vpop.trf.xlu0
        %v1785 = vpop.trf.xlu0
        %v1786 = vpop.trf.xlu0
        %v1787 = vpop.trf.xlu0
        %v1788 = vpop.trf.xlu0
        %v1789 = vpop.trf.xlu0
        %v1790 = vpop.trf.xlu0
        %v1791 = vpop.trf.xlu0
        %v1792 = vpop.trf.xlu0
        %v1793 = vpop.trf.xlu0
        %v1794 = vpop.trf.xlu0
        %v1795 = vpop.trf.xlu0
        %vm1796 = vcmask 64512
        %1797 = vst.msk [vmem:[%s134] sm:$0xff] %vm1796, 0.0
        %1798 = vst.msk [vmem:[%s134 + $0x8] sm:$0xff] %vm1796, 0.0
        %s1799 = scalar_lea.vmem %s134, 48 [#allocation5]
        %1800 = vst.msk [vmem:[%s1799] sm:$0xff] %vm1796, 0.0
        %1801 = vst.msk [vmem:[%s1799 + $0x8] sm:$0xff] %vm1796, 0.0
        %s1802 = scalar_lea.vmem %s134, 16 [#allocation5]
        %1803 = vst.msk [vmem:[%s1802] sm:$0xff] %vm1796, %v1684
        %1804 = vst.msk [vmem:[%s1802 + $0x8] sm:$0xff] %vm1796, %v1716
        %1805 = vst.msk [vmem:[%s1802 + $0x10] sm:$0xff] %vm1796, %v1748
        %1806 = vst.msk [vmem:[%s1802 + $0x18] sm:$0xff] %vm1796, %v1780
        %s1807 = sand.u32 %s52, 1
        %s1808 = scalar_lea.sflag [#allocation4], %s1807
        %s1809 = sand.u32 %s52, 1
        %s1810 = smul.addr %s1809, 64
        %s1811 = scalar_lea.vmem [#allocation5], %s1810
        // Predicated region
        $region29: #{tpu_custom_call.1} parent=23 // pred_check
          %p1812 = pneg %p62
        $region30: #{tpu_custom_call.1} parent=23 // pred_check_branch
          %1814 = sbr.rel (%p1812) target = $region32
        $region31: #{tpu_custom_call.1} parent=23 // pred_region
          %s1816 = ssub.s32 1024, 1024
          %1817 = vsyncadd %s1808, %s1816
          %s1818 = smul.addr %s18, 8
          %s1819 = smul.addr %s1818, 128
          %s1820 = scalar_lea.hbm %s1, %s1819
          %s1821 = sshll.u32 %s1811, 4
          %s1822 = int_to_ptr.vmem [resolvable:$true] %s1821
          %1827 = dma.vmem_to_hbm [thread:$0]  %s1822, 1024, %s1820, %s1808, 128, 128, 8
        $region32: #{tpu_custom_call.1} parent=23 // pred_fallthru
          _
      $region24: #{tpu_custom_call.1} parent=5 // pred_fallthru
        _
      %p1828 = scmp.le.s32.totalorder 2, %s13
      // Predicated region
      $region33: #{tpu_custom_call.1} parent=5 // pred_check
        %p1829 = pneg %p1828
      $region34: #{tpu_custom_call.1} parent=5 // pred_check_branch
        %1831 = sbr.rel (%p1829) target = $region36
      $region35: #{tpu_custom_call.1} parent=5 // pred_region
        %s1832 = ssub.s32 %s13, 2
        // Predicated region
        $region37: #{tpu_custom_call.1} parent=35 // pred_check
          %p1833 = pneg %p68
        $region38: #{tpu_custom_call.1} parent=35 // pred_check_branch
          %1835 = sbr.rel (%p1833) target = $region40
        $region39: #{tpu_custom_call.1} parent=35 // pred_region
          %s1836 = sand.u32 %s53, 1
          %s1837 = scalar_lea.sflag [#allocation4], %s1836
          %s1838 = sand.u32 %s53, 1
          %s1839 = smul.addr %s1838, 64
          %s1840 = scalar_lea.vmem [#allocation5], %s1839
          %1841 = dma.done %s1837, 1024
        $region40: #{tpu_custom_call.1} parent=35 // pred_fallthru
          _
      $region36: #{tpu_custom_call.1} parent=5 // pred_fallthru
        _
    $region6: #{tpu_custom_call.1} parent=1 // loop_footer
      %s17 = sadd.s32 1, %s13
    $region7: #{tpu_custom_call.1} parent=1 // loop_footer_branch
      %12 = sbr.rel target = $region3
    $region8: #{tpu_custom_call.1} parent=1 // loop_exit
      _
    %1842 = vsyncpa [#allocation3], 1
    %s1843 = scalar_lea.sflag [#allocation3], 1
    %1844 = vsyncpa %s1843, 1
    %1845 = vsyncpa [#allocation4], 1
    %s1846 = scalar_lea.sflag [#allocation4], 1
    %1847 = vsyncpa %s1846, 1

</llo_original>
